<compile_context>
chip_gen: v5e
topology: v5e:2x2
jax: 0.10.0
libtpu: 0.0.40
codegen_flags: <defaults>
</compile_context>

<pallas_src>
import jax
import jax.numpy as jnp
from jax.experimental import pallas as pl
from jax.experimental.pallas import tpu as pltpu

IN_FEATURES = 784          # 1 * 28 * 28
IN_FEATURES_PAD = 896      # 7 * 128  (zero-padded contraction dim)
HIDDEN = 512
OUT_FEATURES = 10
OUT_FEATURES_PAD = 128     # lane-dense output width


def _mlp_kernel(x_ref, w1_ref, b1_ref, w2_ref, b2_ref, o_ref):
    # x_ref : (TB, 896)  bf16     w1_ref: (896, 512) bf16    b1_ref: (1, 512) f32
    # w2_ref: (512, 128) bf16     b2_ref: (1, 128)   f32     o_ref : (TB, 128) f32
    x = x_ref[...]

    # fc1: bf16 x bf16 -> f32 accumulation on the MXU; bias + ReLU in f32 on the VPU.
    h = jnp.dot(x, w1_ref[...], preferred_element_type=jnp.float32)
    h = jnp.maximum(h + b1_ref[...], 0.0)

    # dropout(p=0.2): identity in eval mode (no masking, no scaling).

    # fc2: cast activations to bf16 for the MXU, accumulate in f32, bias in f32.
    y = jnp.dot(h.astype(jnp.bfloat16), w2_ref[...], preferred_element_type=jnp.float32)
    o_ref[...] = (y + b2_ref[...]).astype(o_ref.dtype)


def simple_forward(x_nchw, w1, b1, w2, b2, *, tb=None):
    """x_nchw: (N, 1, 28, 28) float32; w1: (784,512); b1: (512,); w2: (512,10); b2: (10,).
    Returns logits (N, 10) float32."""
    B = x_nchw.shape[0]

    # Glue: flatten (start_dim=1..3) like torch.flatten, pad K 784 -> 896, cast to bf16.
    x = x_nchw.reshape(B, IN_FEATURES).astype(jnp.float32)
    x = jnp.pad(x, ((0, 0), (0, IN_FEATURES_PAD - IN_FEATURES)))

    w1p = jnp.pad(w1.astype(jnp.float32),
                  ((0, IN_FEATURES_PAD - IN_FEATURES), (0, 0))).astype(jnp.bfloat16)
    w2p = jnp.pad(w2.astype(jnp.float32),
                  ((0, 0), (0, OUT_FEATURES_PAD - OUT_FEATURES))).astype(jnp.bfloat16)
    b1p = b1.reshape(1, HIDDEN).astype(jnp.float32)
    b2p = jnp.pad(b2.astype(jnp.float32),
                  ((0, OUT_FEATURES_PAD - OUT_FEATURES),)).reshape(1, OUT_FEATURES_PAD)

    # Batch tile: 128 rows for realistic batches (full MXU passes), round small batches up to 8.
    if tb is None:
        tb = 128 if B >= 128 else max(8, ((B + 7) // 8) * 8)
    B_pad = ((B + tb - 1) // tb) * tb
    if B_pad != B:
        x = jnp.pad(x, ((0, B_pad - B), (0, 0)))
    x = x.astype(jnp.bfloat16)

    grid = (B_pad // tb,)

    out_padded = pl.pallas_call(
        _mlp_kernel,
        out_shape=jax.ShapeDtypeStruct((B_pad, OUT_FEATURES_PAD), jnp.float32),
        grid=grid,
        in_specs=[
            pl.BlockSpec((tb, IN_FEATURES_PAD), lambda i: (i, 0)),          # x: tiled over batch
            pl.BlockSpec((IN_FEATURES_PAD, HIDDEN), lambda i: (0, 0)),      # w1: VMEM-resident
            pl.BlockSpec((1, HIDDEN), lambda i: (0, 0)),                    # b1: VMEM-resident
            pl.BlockSpec((HIDDEN, OUT_FEATURES_PAD), lambda i: (0, 0)),     # w2: VMEM-resident
            pl.BlockSpec((1, OUT_FEATURES_PAD), lambda i: (0, 0)),          # b2: VMEM-resident
        ],
        out_specs=pl.BlockSpec((tb, OUT_FEATURES_PAD), lambda i: (i, 0)),
        compiler_params=pltpu.CompilerParams(
            dimension_semantics=("parallel",),   # v7x: shard batch tiles across both TCs
        ),
    )(x, w1p, b1p, w2p, b2p)

    # Strip batch padding and the zero output columns.
    return out_padded[:B, :OUT_FEATURES]


def init_params(key):
    """Deterministic init matching torch.nn.Linear shapes.
    PyTorch stores weight as (out, in); we keep the transposed (in, out) layout."""
    k1, k2, k3, k4 = jax.random.split(key, 4)
    bound1 = 1.0 / jnp.sqrt(IN_FEATURES)
    bound2 = 1.0 / jnp.sqrt(HIDDEN)
    w1 = jax.random.uniform(k1, (IN_FEATURES, HIDDEN), jnp.float32, -bound1, bound1)
    b1 = jax.random.uniform(k2, (HIDDEN,), jnp.float32, -bound1, bound1)
    w2 = jax.random.uniform(k3, (HIDDEN, OUT_FEATURES), jnp.float32, -bound2, bound2)
    b2 = jax.random.uniform(k4, (OUT_FEATURES,), jnp.float32, -bound2, bound2)
    return w1, b1, w2, b2


if __name__ == "__main__":
    key = jax.random.PRNGKey(0)
    k_x, k_p = jax.random.split(key)

    B = 8  # small batch
    x = jax.random.normal(k_x, (B, 1, 28, 28), jnp.float32)  # NCHW, like PyTorch
    w1, b1, w2, b2 = init_params(k_p)

    out = simple_forward(x, w1, b1, w2, b2)
    out = jax.block_until_ready(out)
    assert out.shape == (B, OUT_FEATURES)

    # Reference with the SAME bf16 input/weight quantization + f32 accumulation
    # (verifies the kernel itself, not the bf16 rounding).
    x_flat = x.reshape(B, -1)
    xb = x_flat.astype(jnp.bfloat16)
    w1b = w1.astype(jnp.bfloat16)
    w2b = w2.astype(jnp.bfloat16)
    h_ref = jnp.maximum(
        jnp.dot(xb, w1b, preferred_element_type=jnp.float32) + b1, 0.0)
    ref = jnp.dot(h_ref.astype(jnp.bfloat16), w2b,
                  preferred_element_type=jnp.float32) + b2
    assert jnp.allclose(out, ref, atol=2e-2, rtol=2e-2), \
        f"max abs diff {jnp.max(jnp.abs(out - ref))}"

    # Loose sanity check against the pure-f32 math (bounds bf16 quantization error).
    ref_f32 = jnp.maximum(x_flat @ w1 + b1, 0.0) @ w2 + b2
    assert jnp.max(jnp.abs(out - ref_f32)) < 0.5

    print("KERNEL_OK")
</pallas_src>

<mosaic_0001>
module attributes {stable_mosaic.version = 11 : i64} {
  func.func @_mlp_kernel(%arg0: i32, %arg1: memref<8x896xbf16, #tpu.memory_space<vmem>>, %arg2: memref<896x512xbf16, #tpu.memory_space<vmem>>, %arg3: memref<1x512xf32, #tpu.memory_space<vmem>>, %arg4: memref<512x128xbf16, #tpu.memory_space<vmem>>, %arg5: memref<1x128xf32, #tpu.memory_space<vmem>>, %arg6: memref<8x128xf32, #tpu.memory_space<vmem>>) attributes {dimension_semantics = [#tpu.dimension_semantics<parallel>], iteration_bounds = array<i64: 1>, scalar_prefetch = 0 : i64, scratch_operands = 0 : i64, tpu.core_type = #tpu.core_type<tc>, window_params = [{transform_indices = @transform_0, window_bounds = array<i64: 8, 896>}, {pipeline_mode = #tpu.pipeline_mode<synchronous>, transform_indices = @transform_1, window_bounds = array<i64: 896, 512>}, {pipeline_mode = #tpu.pipeline_mode<synchronous>, transform_indices = @transform_2, window_bounds = array<i64: 1, 512>}, {pipeline_mode = #tpu.pipeline_mode<synchronous>, transform_indices = @transform_3, window_bounds = array<i64: 512, 128>}, {pipeline_mode = #tpu.pipeline_mode<synchronous>, transform_indices = @transform_4, window_bounds = array<i64: 1, 128>}, {transform_indices = @transform_5, window_bounds = array<i64: 8, 128>}]} {
    %c0 = arith.constant 0 : index
    %c0_0 = arith.constant 0 : index
    %0 = vector.load %arg1[%c0, %c0_0] : memref<8x896xbf16, #tpu.memory_space<vmem>>, vector<8x896xbf16>
    %c0_1 = arith.constant 0 : index
    %c0_2 = arith.constant 0 : index
    %1 = vector.load %arg2[%c0_1, %c0_2] : memref<896x512xbf16, #tpu.memory_space<vmem>>, vector<896x512xbf16>
    %cst = arith.constant dense<0.000000e+00> : vector<8x512xf32>
    %2 = tpu.matmul %0, %1, %cst {dimension_numbers = #tpu.dot_dimension_numbers<[1], [0], [0], [1], [0, 0, 1, 1], [], []>} : vector<8x896xbf16>, vector<896x512xbf16>, vector<8x512xf32> -> vector<8x512xf32>
    %c0_3 = arith.constant 0 : index
    %c0_4 = arith.constant 0 : index
    %3 = vector.load %arg3[%c0_3, %c0_4] : memref<1x512xf32, #tpu.memory_space<vmem>>, vector<1x512xf32>
    %4 = vector.broadcast %3 : vector<1x512xf32> to vector<8x512xf32>
    %5 = arith.addf %2, %4 : vector<8x512xf32>
    %cst_5 = arith.constant 0.000000e+00 : f32
    %6 = vector.broadcast %cst_5 : f32 to vector<8x512xf32>
    %7 = arith.maximumf %5, %6 : vector<8x512xf32>
    %8 = arith.truncf %7 : vector<8x512xf32> to vector<8x512xbf16>
    %c0_6 = arith.constant 0 : index
    %c0_7 = arith.constant 0 : index
    %9 = vector.load %arg4[%c0_6, %c0_7] : memref<512x128xbf16, #tpu.memory_space<vmem>>, vector<512x128xbf16>
    %cst_8 = arith.constant dense<0.000000e+00> : vector<8x128xf32>
    %10 = tpu.matmul %8, %9, %cst_8 {dimension_numbers = #tpu.dot_dimension_numbers<[1], [0], [0], [1], [0, 0, 1, 1], [], []>} : vector<8x512xbf16>, vector<512x128xbf16>, vector<8x128xf32> -> vector<8x128xf32>
    %c0_9 = arith.constant 0 : index
    %c0_10 = arith.constant 0 : index
    %11 = vector.load %arg5[%c0_9, %c0_10] : memref<1x128xf32, #tpu.memory_space<vmem>>, vector<1x128xf32>
    %12 = vector.broadcast %11 : vector<1x128xf32> to vector<8x128xf32>
    %13 = arith.addf %10, %12 : vector<8x128xf32>
    %c0_11 = arith.constant 0 : index
    %c0_12 = arith.constant 0 : index
    %14 = vector.load %arg6[%c0_11, %c0_12] : memref<8x128xf32, #tpu.memory_space<vmem>>, vector<8x128xf32>
    tpu.vector_store %arg6[%c0_11, %c0_12], %13 {strides = array<i32>} : memref<8x128xf32, #tpu.memory_space<vmem>>, vector<8x128xf32>,
    return
  }
  func.func @transform_0(%arg0: i32) -> (i32, i32) {
    %c0_i32 = arith.constant 0 : i32
    %c0_i32_0 = arith.constant 0 : i32
    return %arg0, %c0_i32 : i32, i32
  }
  func.func @transform_1(%arg0: i32) -> (i32, i32) {
    %c0_i32 = arith.constant 0 : i32
    %c0_i32_0 = arith.constant 0 : i32
    %c0_i32_1 = arith.constant 0 : i32
    return %c0_i32, %c0_i32_0 : i32, i32
  }
  func.func @transform_2(%arg0: i32) -> (i32, i32) {
    %c0_i32 = arith.constant 0 : i32
    %c0_i32_0 = arith.constant 0 : i32
    %c0_i32_1 = arith.constant 0 : i32
    return %c0_i32, %c0_i32_0 : i32, i32
  }
  func.func @transform_3(%arg0: i32) -> (i32, i32) {
    %c0_i32 = arith.constant 0 : i32
    %c0_i32_0 = arith.constant 0 : i32
    %c0_i32_1 = arith.constant 0 : i32
    return %c0_i32, %c0_i32_0 : i32, i32
  }
  func.func @transform_4(%arg0: i32) -> (i32, i32) {
    %c0_i32 = arith.constant 0 : i32
    %c0_i32_0 = arith.constant 0 : i32
    %c0_i32_1 = arith.constant 0 : i32
    return %c0_i32, %c0_i32_0 : i32, i32
  }
  func.func @transform_5(%arg0: i32) -> (i32, i32) {
    %c0_i32 = arith.constant 0 : i32
    %c0_i32_0 = arith.constant 0 : i32
    return %arg0, %c0_i32 : i32, i32
  }
}

</mosaic_0001>

<llo_original>
// kernel: tpu_custom_call.1
$region0: #{tpu_custom_call.1}
  #allocation0 [shape = 'u32[]', space=smem, size = 0x4, offset = 0x4, fixed_abs, tag = 'smem constant byte address 0x4 - core index']
  #allocation1 [shape = 'u32[72,128]{1,0:T(1,128)}', space=vmem, size = 0x9000, scoped, tag = 'internal scratch']
  %s0 = inlined_call_operand.hbm [shape: bf16[8,896], index: 0, kind: input, shape index: {}]
  %s1 = inlined_call_operand.hbm [shape: bf16[896,512], index: 1, kind: input, shape index: {}]
  %s2 = inlined_call_operand.hbm [shape: f32[1,512], index: 2, kind: input, shape index: {}]
  %s3 = inlined_call_operand.hbm [shape: bf16[512,128], index: 3, kind: input, shape index: {}]
  %s4 = inlined_call_operand.vmem [shape: f32[1,128], index: 4, kind: input, shape index: {}]
  %s5 = inlined_call_operand.hbm [shape: f32[8,128], index: 5, kind: output, shape index: {}]
  %s6 = sld [smem:[#allocation0]]
  $region46: #{tpu_custom_call.1} parent=0
    _
  %s8 = ssub.s32 1, %s6
  %s9 = scalar_select 0, %s8, %s6
  $region1: #{tpu_custom_call.1} parent=0
    #allocation2 [shape = 'u8[14336]{0}', space=vmem, size = 0x3800, scoped, tag = 'input window, operand 0, single buffered']
    #allocation3 [shape = 's32[1]{0}', space=sflag, size = 0x4, scoped, tag = 'scoped memory for tpu_custom_call.1']
    #allocation4 [shape = 's32[1]{0}', space=sflag, size = 0x4, scoped, tag = 'scoped memory for tpu_custom_call.1']
    #allocation5 [shape = 'u8[917504]{0}', space=vmem, size = 0xe0000, scoped, tag = 'input window, operand 1, single buffered']
    #allocation6 [shape = 's32[1]{0}', space=sflag, size = 0x4, scoped, tag = 'scoped memory for tpu_custom_call.1']
    #allocation7 [shape = 'u8[2048]{0}', space=vmem, size = 0x800, scoped, tag = 'input window, operand 2, single buffered']
    #allocation8 [shape = 'u8[131072]{0}', space=vmem, size = 0x20000, scoped, tag = 'input window, operand 3, single buffered']
    #allocation9 [shape = 's32[1]{0}', space=sflag, size = 0x4, scoped, tag = 'scoped memory for tpu_custom_call.1']
    #allocation10 [shape = 'u8[4096]{0}', space=vmem, size = 0x1000, scoped, tag = 'output window, operand 0, single buffered']
    %10 = vsyncpa [#allocation3], 0
    %11 = vsyncpa [#allocation6], 0
    %12 = vsyncpa [#allocation9], 0
    %13 = vsyncpa [#allocation4], 0
    // Predicated region
    $region2: #{tpu_custom_call.1} parent=1 // pred_check
      _
    $region3: #{tpu_custom_call.1} parent=1 // pred_check_branch
      %15 = sbr.rel (0) target = $region5
    $region4: #{tpu_custom_call.1} parent=1 // pred_region
      %17 = vsyncadd [#allocation3], 0
      %s19 = sshll.u32 %s0, 4
      %s20 = int_to_ptr.hbm [resolvable:$true] %s19
      %s21 = sshll.u32 [#allocation2], 4
      %s22 = int_to_ptr.vmem [resolvable:$true] %s21
      %24 = dma.hbm_to_vmem [thread:$0]  %s20, 448, %s22, [#allocation3]
    $region5: #{tpu_custom_call.1} parent=1 // pred_fallthru
      _
    // Predicated region
    $region6: #{tpu_custom_call.1} parent=1 // pred_check
      _
    $region7: #{tpu_custom_call.1} parent=1 // pred_check_branch
      %26 = sbr.rel (0) target = $region9
    $region8: #{tpu_custom_call.1} parent=1 // pred_region
      %28 = vsyncadd [#allocation6], 0
      %s29 = sshll.u32 %s1, 4
      %s30 = int_to_ptr.hbm [resolvable:$true] %s29
      %s31 = sshll.u32 [#allocation5], 4
      %s32 = int_to_ptr.vmem [resolvable:$true] %s31
      %37 = dma.hbm_to_vmem [thread:$0]  %s30, 28672, %s32, [#allocation6], 256, 256, 16
    $region9: #{tpu_custom_call.1} parent=1 // pred_fallthru
      _
    // Predicated region
    $region10: #{tpu_custom_call.1} parent=1 // pred_check
      _
    $region11: #{tpu_custom_call.1} parent=1 // pred_check_branch
      %39 = sbr.rel (0) target = $region13
    $region12: #{tpu_custom_call.1} parent=1 // pred_region
      %41 = vsyncadd [#allocation6], 0
      %s43 = sshll.u32 %s2, 4
      %s44 = int_to_ptr.hbm [resolvable:$true] %s43
      %s45 = sshll.u32 [#allocation7], 4
      %s46 = int_to_ptr.vmem [resolvable:$true] %s45
      %48 = dma.hbm_to_vmem [thread:$0]  %s44, 64, %s46, [#allocation6]
    $region13: #{tpu_custom_call.1} parent=1 // pred_fallthru
      _
    // Predicated region
    $region14: #{tpu_custom_call.1} parent=1 // pred_check
      _
    $region15: #{tpu_custom_call.1} parent=1 // pred_check_branch
      %50 = sbr.rel (0) target = $region17
    $region16: #{tpu_custom_call.1} parent=1 // pred_region
      %52 = vsyncadd [#allocation9], 0
      %s53 = sshll.u32 %s3, 4
      %s54 = int_to_ptr.hbm [resolvable:$true] %s53
      %s55 = sshll.u32 [#allocation8], 4
      %s56 = int_to_ptr.vmem [resolvable:$true] %s55
      %61 = dma.hbm_to_vmem [thread:$0]  %s54, 4096, %s56, [#allocation9], 64, 64, 4
    $region17: #{tpu_custom_call.1} parent=1 // pred_fallthru
      _
    // Predicated region
    $region18: #{tpu_custom_call.1} parent=1 // pred_check
      _
    $region19: #{tpu_custom_call.1} parent=1 // pred_check_branch
      %63 = sbr.rel (0) target = $region21
    $region20: #{tpu_custom_call.1} parent=1 // pred_region
      _
    $region21: #{tpu_custom_call.1} parent=1 // pred_fallthru
      _
    // Predicated region
    $region22: #{tpu_custom_call.1} parent=1 // pred_check
      _
    $region23: #{tpu_custom_call.1} parent=1 // pred_check_branch
      %65 = sbr.rel (0) target = $region25
    $region24: #{tpu_custom_call.1} parent=1 // pred_region
      %67 = dma.done [#allocation3], 448
    $region25: #{tpu_custom_call.1} parent=1 // pred_fallthru
      _
    // Predicated region
    $region26: #{tpu_custom_call.1} parent=1 // pred_check
      _
    $region27: #{tpu_custom_call.1} parent=1 // pred_check_branch
      %69 = sbr.rel (0) target = $region29
    $region28: #{tpu_custom_call.1} parent=1 // pred_region
      %71 = dma.done [#allocation6], 28672
    $region29: #{tpu_custom_call.1} parent=1 // pred_fallthru
      _
    // Predicated region
    $region30: #{tpu_custom_call.1} parent=1 // pred_check
      _
    $region31: #{tpu_custom_call.1} parent=1 // pred_check_branch
      %73 = sbr.rel (0) target = $region33
    $region32: #{tpu_custom_call.1} parent=1 // pred_region
      %75 = dma.done [#allocation6], 64
    $region33: #{tpu_custom_call.1} parent=1 // pred_fallthru
      _
    // Predicated region
    $region34: #{tpu_custom_call.1} parent=1 // pred_check
      _
    $region35: #{tpu_custom_call.1} parent=1 // pred_check_branch
      %77 = sbr.rel (0) target = $region37
    $region36: #{tpu_custom_call.1} parent=1 // pred_region
      %79 = dma.done [#allocation9], 4096
    $region37: #{tpu_custom_call.1} parent=1 // pred_fallthru
      _
    %v80 = vld [vmem:[#allocation2] sm:$0xff]
    %v81 = vld [vmem:[#allocation2 + $0x8] sm:$0xff]
    %v82 = vld [vmem:[#allocation2 + $0x10] sm:$0xff]
    %v83 = vld [vmem:[#allocation2 + $0x18] sm:$0xf]
    %v84 = vld [vmem:[#allocation5] sm:$0xff]
    %v85 = vld [vmem:[#allocation5 + $0x8] sm:$0xff]
    %v86 = vld [vmem:[#allocation5 + $0x10] sm:$0xff]
    %v87 = vld [vmem:[#allocation5 + $0x18] sm:$0xff]
    %v88 = vld [vmem:[#allocation5 + $0x20] sm:$0xff]
    %v89 = vld [vmem:[#allocation5 + $0x28] sm:$0xff]
    %v90 = vld [vmem:[#allocation5 + $0x30] sm:$0xff]
    %v91 = vld [vmem:[#allocation5 + $0x38] sm:$0xff]
    %v92 = vld [vmem:[#allocation5 + $0x40] sm:$0xff]
    %v93 = vld [vmem:[#allocation5 + $0x48] sm:$0xff]
    %v94 = vld [vmem:[#allocation5 + $0x50] sm:$0xff]
    %v95 = vld [vmem:[#allocation5 + $0x58] sm:$0xff]
    %v96 = vld [vmem:[#allocation5 + $0x60] sm:$0xff]
    %v97 = vld [vmem:[#allocation5 + $0x68] sm:$0xff]
    %v98 = vld [vmem:[#allocation5 + $0x70] sm:$0xff]
    %v99 = vld [vmem:[#allocation5 + $0x78] sm:$0xff]
    %v100 = vld [vmem:[#allocation5 + $0x80] sm:$0xff]
    %v101 = vld [vmem:[#allocation5 + $0x88] sm:$0xff]
    %v102 = vld [vmem:[#allocation5 + $0x90] sm:$0xff]
    %v103 = vld [vmem:[#allocation5 + $0x98] sm:$0xff]
    %v104 = vld [vmem:[#allocation5 + $0xa0] sm:$0xff]
    %v105 = vld [vmem:[#allocation5 + $0xa8] sm:$0xff]
    %v106 = vld [vmem:[#allocation5 + $0xb0] sm:$0xff]
    %v107 = vld [vmem:[#allocation5 + $0xb8] sm:$0xff]
    %v108 = vld [vmem:[#allocation5 + $0xc0] sm:$0xff]
    %v109 = vld [vmem:[#allocation5 + $0xc8] sm:$0xff]
    %v110 = vld [vmem:[#allocation5 + $0xd0] sm:$0xff]
    %v111 = vld [vmem:[#allocation5 + $0xd8] sm:$0xff]
    %v112 = vld [vmem:[#allocation5 + $0xe0] sm:$0xff]
    %v113 = vld [vmem:[#allocation5 + $0xe8] sm:$0xff]
    %v114 = vld [vmem:[#allocation5 + $0xf0] sm:$0xff]
    %v115 = vld [vmem:[#allocation5 + $0xf8] sm:$0xff]
    %v116 = vld [vmem:[#allocation5 + $0x100] sm:$0xff]
    %v117 = vld [vmem:[#allocation5 + $0x108] sm:$0xff]
    %v118 = vld [vmem:[#allocation5 + $0x110] sm:$0xff]
    %v119 = vld [vmem:[#allocation5 + $0x118] sm:$0xff]
    %v120 = vld [vmem:[#allocation5 + $0x120] sm:$0xff]
    %v121 = vld [vmem:[#allocation5 + $0x128] sm:$0xff]
    %v122 = vld [vmem:[#allocation5 + $0x130] sm:$0xff]
    %v123 = vld [vmem:[#allocation5 + $0x138] sm:$0xff]
    %v124 = vld [vmem:[#allocation5 + $0x140] sm:$0xff]
    %v125 = vld [vmem:[#allocation5 + $0x148] sm:$0xff]
    %v126 = vld [vmem:[#allocation5 + $0x150] sm:$0xff]
    %v127 = vld [vmem:[#allocation5 + $0x158] sm:$0xff]
    %v128 = vld [vmem:[#allocation5 + $0x160] sm:$0xff]
    %v129 = vld [vmem:[#allocation5 + $0x168] sm:$0xff]
    %v130 = vld [vmem:[#allocation5 + $0x170] sm:$0xff]
    %v131 = vld [vmem:[#allocation5 + $0x178] sm:$0xff]
    %v132 = vld [vmem:[#allocation5 + $0x180] sm:$0xff]
    %v133 = vld [vmem:[#allocation5 + $0x188] sm:$0xff]
    %v134 = vld [vmem:[#allocation5 + $0x190] sm:$0xff]
    %v135 = vld [vmem:[#allocation5 + $0x198] sm:$0xff]
    %v136 = vld [vmem:[#allocation5 + $0x1a0] sm:$0xff]
    %v137 = vld [vmem:[#allocation5 + $0x1a8] sm:$0xff]
    %v138 = vld [vmem:[#allocation5 + $0x1b0] sm:$0xff]
    %v139 = vld [vmem:[#allocation5 + $0x1b8] sm:$0xff]
    %v140 = vld [vmem:[#allocation5 + $0x1c0] sm:$0xff]
    %v141 = vld [vmem:[#allocation5 + $0x1c8] sm:$0xff]
    %v142 = vld [vmem:[#allocation5 + $0x1d0] sm:$0xff]
    %v143 = vld [vmem:[#allocation5 + $0x1d8] sm:$0xff]
    %v144 = vld [vmem:[#allocation5 + $0x1e0] sm:$0xff]
    %v145 = vld [vmem:[#allocation5 + $0x1e8] sm:$0xff]
    %v146 = vld [vmem:[#allocation5 + $0x1f0] sm:$0xff]
    %v147 = vld [vmem:[#allocation5 + $0x1f8] sm:$0xff]
    %v148 = vld [vmem:[#allocation5 + $0x200] sm:$0xff]
    %v149 = vld [vmem:[#allocation5 + $0x208] sm:$0xff]
    %v150 = vld [vmem:[#allocation5 + $0x210] sm:$0xff]
    %v151 = vld [vmem:[#allocation5 + $0x218] sm:$0xff]
    %v152 = vld [vmem:[#allocation5 + $0x220] sm:$0xff]
    %v153 = vld [vmem:[#allocation5 + $0x228] sm:$0xff]
    %v154 = vld [vmem:[#allocation5 + $0x230] sm:$0xff]
    %v155 = vld [vmem:[#allocation5 + $0x238] sm:$0xff]
    %v156 = vld [vmem:[#allocation5 + $0x240] sm:$0xff]
    %v157 = vld [vmem:[#allocation5 + $0x248] sm:$0xff]
    %v158 = vld [vmem:[#allocation5 + $0x250] sm:$0xff]
    %v159 = vld [vmem:[#allocation5 + $0x258] sm:$0xff]
    %v160 = vld [vmem:[#allocation5 + $0x260] sm:$0xff]
    %v161 = vld [vmem:[#allocation5 + $0x268] sm:$0xff]
    %v162 = vld [vmem:[#allocation5 + $0x270] sm:$0xff]
    %v163 = vld [vmem:[#allocation5 + $0x278] sm:$0xff]
    %v164 = vld [vmem:[#allocation5 + $0x280] sm:$0xff]
    %v165 = vld [vmem:[#allocation5 + $0x288] sm:$0xff]
    %v166 = vld [vmem:[#allocation5 + $0x290] sm:$0xff]
    %v167 = vld [vmem:[#allocation5 + $0x298] sm:$0xff]
    %v168 = vld [vmem:[#allocation5 + $0x2a0] sm:$0xff]
    %v169 = vld [vmem:[#allocation5 + $0x2a8] sm:$0xff]
    %v170 = vld [vmem:[#allocation5 + $0x2b0] sm:$0xff]
    %v171 = vld [vmem:[#allocation5 + $0x2b8] sm:$0xff]
    %v172 = vld [vmem:[#allocation5 + $0x2c0] sm:$0xff]
    %v173 = vld [vmem:[#allocation5 + $0x2c8] sm:$0xff]
    %v174 = vld [vmem:[#allocation5 + $0x2d0] sm:$0xff]
    %v175 = vld [vmem:[#allocation5 + $0x2d8] sm:$0xff]
    %v176 = vld [vmem:[#allocation5 + $0x2e0] sm:$0xff]
    %v177 = vld [vmem:[#allocation5 + $0x2e8] sm:$0xff]
    %v178 = vld [vmem:[#allocation5 + $0x2f0] sm:$0xff]
    %v179 = vld [vmem:[#allocation5 + $0x2f8] sm:$0xff]
    %v180 = vld [vmem:[#allocation5 + $0x300] sm:$0xff]
    %v181 = vld [vmem:[#allocation5 + $0x308] sm:$0xff]
    %v182 = vld [vmem:[#allocation5 + $0x310] sm:$0xff]
    %v183 = vld [vmem:[#allocation5 + $0x318] sm:$0xff]
    %v184 = vld [vmem:[#allocation5 + $0x320] sm:$0xff]
    %v185 = vld [vmem:[#allocation5 + $0x328] sm:$0xff]
    %v186 = vld [vmem:[#allocation5 + $0x330] sm:$0xff]
    %v187 = vld [vmem:[#allocation5 + $0x338] sm:$0xff]
    %v188 = vld [vmem:[#allocation5 + $0x340] sm:$0xff]
    %v189 = vld [vmem:[#allocation5 + $0x348] sm:$0xff]
    %v190 = vld [vmem:[#allocation5 + $0x350] sm:$0xff]
    %v191 = vld [vmem:[#allocation5 + $0x358] sm:$0xff]
    %v192 = vld [vmem:[#allocation5 + $0x360] sm:$0xff]
    %v193 = vld [vmem:[#allocation5 + $0x368] sm:$0xff]
    %v194 = vld [vmem:[#allocation5 + $0x370] sm:$0xff]
    %v195 = vld [vmem:[#allocation5 + $0x378] sm:$0xff]
    %v196 = vld [vmem:[#allocation5 + $0x380] sm:$0xff]
    %v197 = vld [vmem:[#allocation5 + $0x388] sm:$0xff]
    %v198 = vld [vmem:[#allocation5 + $0x390] sm:$0xff]
    %v199 = vld [vmem:[#allocation5 + $0x398] sm:$0xff]
    %v200 = vld [vmem:[#allocation5 + $0x3a0] sm:$0xff]
    %v201 = vld [vmem:[#allocation5 + $0x3a8] sm:$0xff]
    %v202 = vld [vmem:[#allocation5 + $0x3b0] sm:$0xff]
    %v203 = vld [vmem:[#allocation5 + $0x3b8] sm:$0xff]
    %v204 = vld [vmem:[#allocation5 + $0x3c0] sm:$0xff]
    %v205 = vld [vmem:[#allocation5 + $0x3c8] sm:$0xff]
    %v206 = vld [vmem:[#allocation5 + $0x3d0] sm:$0xff]
    %v207 = vld [vmem:[#allocation5 + $0x3d8] sm:$0xff]
    %v208 = vld [vmem:[#allocation5 + $0x3e0] sm:$0xff]
    %v209 = vld [vmem:[#allocation5 + $0x3e8] sm:$0xff]
    %v210 = vld [vmem:[#allocation5 + $0x3f0] sm:$0xff]
    %v211 = vld [vmem:[#allocation5 + $0x3f8] sm:$0xff]
    %v212 = vld [vmem:[#allocation5 + $0x400] sm:$0xff]
    %v213 = vld [vmem:[#allocation5 + $0x408] sm:$0xff]
    %v214 = vld [vmem:[#allocation5 + $0x410] sm:$0xff]
    %v215 = vld [vmem:[#allocation5 + $0x418] sm:$0xff]
    %v216 = vld [vmem:[#allocation5 + $0x420] sm:$0xff]
    %v217 = vld [vmem:[#allocation5 + $0x428] sm:$0xff]
    %v218 = vld [vmem:[#allocation5 + $0x430] sm:$0xff]
    %v219 = vld [vmem:[#allocation5 + $0x438] sm:$0xff]
    %v220 = vld [vmem:[#allocation5 + $0x440] sm:$0xff]
    %v221 = vld [vmem:[#allocation5 + $0x448] sm:$0xff]
    %v222 = vld [vmem:[#allocation5 + $0x450] sm:$0xff]
    %v223 = vld [vmem:[#allocation5 + $0x458] sm:$0xff]
    %v224 = vld [vmem:[#allocation5 + $0x460] sm:$0xff]
    %v225 = vld [vmem:[#allocation5 + $0x468] sm:$0xff]
    %v226 = vld [vmem:[#allocation5 + $0x470] sm:$0xff]
    %v227 = vld [vmem:[#allocation5 + $0x478] sm:$0xff]
    %v228 = vld [vmem:[#allocation5 + $0x480] sm:$0xff]
    %v229 = vld [vmem:[#allocation5 + $0x488] sm:$0xff]
    %v230 = vld [vmem:[#allocation5 + $0x490] sm:$0xff]
    %v231 = vld [vmem:[#allocation5 + $0x498] sm:$0xff]
    %v232 = vld [vmem:[#allocation5 + $0x4a0] sm:$0xff]
    %v233 = vld [vmem:[#allocation5 + $0x4a8] sm:$0xff]
    %v234 = vld [vmem:[#allocation5 + $0x4b0] sm:$0xff]
    %v235 = vld [vmem:[#allocation5 + $0x4b8] sm:$0xff]
    %v236 = vld [vmem:[#allocation5 + $0x4c0] sm:$0xff]
    %v237 = vld [vmem:[#allocation5 + $0x4c8] sm:$0xff]
    %v238 = vld [vmem:[#allocation5 + $0x4d0] sm:$0xff]
    %v239 = vld [vmem:[#allocation5 + $0x4d8] sm:$0xff]
    %v240 = vld [vmem:[#allocation5 + $0x4e0] sm:$0xff]
    %v241 = vld [vmem:[#allocation5 + $0x4e8] sm:$0xff]
    %v242 = vld [vmem:[#allocation5 + $0x4f0] sm:$0xff]
    %v243 = vld [vmem:[#allocation5 + $0x4f8] sm:$0xff]
    %v244 = vld [vmem:[#allocation5 + $0x500] sm:$0xff]
    %v245 = vld [vmem:[#allocation5 + $0x508] sm:$0xff]
    %v246 = vld [vmem:[#allocation5 + $0x510] sm:$0xff]
    %v247 = vld [vmem:[#allocation5 + $0x518] sm:$0xff]
    %v248 = vld [vmem:[#allocation5 + $0x520] sm:$0xff]
    %v249 = vld [vmem:[#allocation5 + $0x528] sm:$0xff]
    %v250 = vld [vmem:[#allocation5 + $0x530] sm:$0xff]
    %v251 = vld [vmem:[#allocation5 + $0x538] sm:$0xff]
    %v252 = vld [vmem:[#allocation5 + $0x540] sm:$0xff]
    %v253 = vld [vmem:[#allocation5 + $0x548] sm:$0xff]
    %v254 = vld [vmem:[#allocation5 + $0x550] sm:$0xff]
    %v255 = vld [vmem:[#allocation5 + $0x558] sm:$0xff]
    %v256 = vld [vmem:[#allocation5 + $0x560] sm:$0xff]
    %v257 = vld [vmem:[#allocation5 + $0x568] sm:$0xff]
    %v258 = vld [vmem:[#allocation5 + $0x570] sm:$0xff]
    %v259 = vld [vmem:[#allocation5 + $0x578] sm:$0xff]
    %v260 = vld [vmem:[#allocation5 + $0x580] sm:$0xff]
    %v261 = vld [vmem:[#allocation5 + $0x588] sm:$0xff]
    %v262 = vld [vmem:[#allocation5 + $0x590] sm:$0xff]
    %v263 = vld [vmem:[#allocation5 + $0x598] sm:$0xff]
    %v264 = vld [vmem:[#allocation5 + $0x5a0] sm:$0xff]
    %v265 = vld [vmem:[#allocation5 + $0x5a8] sm:$0xff]
    %v266 = vld [vmem:[#allocation5 + $0x5b0] sm:$0xff]
    %v267 = vld [vmem:[#allocation5 + $0x5b8] sm:$0xff]
    %v268 = vld [vmem:[#allocation5 + $0x5c0] sm:$0xff]
    %v269 = vld [vmem:[#allocation5 + $0x5c8] sm:$0xff]
    %v270 = vld [vmem:[#allocation5 + $0x5d0] sm:$0xff]
    %v271 = vld [vmem:[#allocation5 + $0x5d8] sm:$0xff]
    %v272 = vld [vmem:[#allocation5 + $0x5e0] sm:$0xff]
    %v273 = vld [vmem:[#allocation5 + $0x5e8] sm:$0xff]
    %v274 = vld [vmem:[#allocation5 + $0x5f0] sm:$0xff]
    %v275 = vld [vmem:[#allocation5 + $0x5f8] sm:$0xff]
    %v276 = vld [vmem:[#allocation5 + $0x600] sm:$0xff]
    %v277 = vld [vmem:[#allocation5 + $0x608] sm:$0xff]
    %v278 = vld [vmem:[#allocation5 + $0x610] sm:$0xff]
    %v279 = vld [vmem:[#allocation5 + $0x618] sm:$0xff]
    %v280 = vld [vmem:[#allocation5 + $0x620] sm:$0xff]
    %v281 = vld [vmem:[#allocation5 + $0x628] sm:$0xff]
    %v282 = vld [vmem:[#allocation5 + $0x630] sm:$0xff]
    %v283 = vld [vmem:[#allocation5 + $0x638] sm:$0xff]
    %v284 = vld [vmem:[#allocation5 + $0x640] sm:$0xff]
    %v285 = vld [vmem:[#allocation5 + $0x648] sm:$0xff]
    %v286 = vld [vmem:[#allocation5 + $0x650] sm:$0xff]
    %v287 = vld [vmem:[#allocation5 + $0x658] sm:$0xff]
    %v288 = vld [vmem:[#allocation5 + $0x660] sm:$0xff]
    %v289 = vld [vmem:[#allocation5 + $0x668] sm:$0xff]
    %v290 = vld [vmem:[#allocation5 + $0x670] sm:$0xff]
    %v291 = vld [vmem:[#allocation5 + $0x678] sm:$0xff]
    %v292 = vld [vmem:[#allocation5 + $0x680] sm:$0xff]
    %v293 = vld [vmem:[#allocation5 + $0x688] sm:$0xff]
    %v294 = vld [vmem:[#allocation5 + $0x690] sm:$0xff]
    %v295 = vld [vmem:[#allocation5 + $0x698] sm:$0xff]
    %v296 = vld [vmem:[#allocation5 + $0x6a0] sm:$0xff]
    %v297 = vld [vmem:[#allocation5 + $0x6a8] sm:$0xff]
    %v298 = vld [vmem:[#allocation5 + $0x6b0] sm:$0xff]
    %v299 = vld [vmem:[#allocation5 + $0x6b8] sm:$0xff]
    %v300 = vld [vmem:[#allocation5 + $0x6c0] sm:$0xff]
    %v301 = vld [vmem:[#allocation5 + $0x6c8] sm:$0xff]
    %v302 = vld [vmem:[#allocation5 + $0x6d0] sm:$0xff]
    %v303 = vld [vmem:[#allocation5 + $0x6d8] sm:$0xff]
    %v304 = vld [vmem:[#allocation5 + $0x6e0] sm:$0xff]
    %v305 = vld [vmem:[#allocation5 + $0x6e8] sm:$0xff]
    %v306 = vld [vmem:[#allocation5 + $0x6f0] sm:$0xff]
    %v307 = vld [vmem:[#allocation5 + $0x6f8] sm:$0xff]
    %v308 = vld [vmem:[#allocation7] sm:$0xf]
    %v310 = vperm.slane %v308, 0
    %v311 = vperm.slane %v308, 1
    %v312 = vperm.slane %v308, 2
    %v313 = vperm.slane %v308, 3
    %v322 = vunpack.c.l.b16 %v80
    %v323 = vunpack.c.h.b16 %v80
    %v324 = vunpack.c.l.b16 %v81
    %v325 = vunpack.c.h.b16 %v81
    %v326 = vunpack.c.l.b16 %v82
    %v327 = vunpack.c.h.b16 %v82
    %v328 = vunpack.c.l.b16 %v83
    %v329 = vpack.c.b16 %v322, %v322
    %v330 = vpack.c.b16 %v323, %v323
    %v331 = vpack.c.b16 %v324, %v324
    %v332 = vpack.c.b16 %v325, %v325
    %v333 = vpack.c.b16 %v326, %v326
    %v334 = vpack.c.b16 %v327, %v327
    %v335 = vpack.c.b16 %v328, %v328
    %v567 = vunpack.c.l.b16 %v84
    %v568 = vunpack.c.h.b16 %v84
    %v569 = vunpack.c.l.b16 %v85
    %v570 = vunpack.c.h.b16 %v85
    %v571 = vunpack.c.l.b16 %v86
    %v572 = vunpack.c.h.b16 %v86
    %v573 = vunpack.c.l.b16 %v87
    %v574 = vunpack.c.h.b16 %v87
    %v575 = vunpack.c.l.b16 %v88
    %v576 = vunpack.c.h.b16 %v88
    %v577 = vunpack.c.l.b16 %v89
    %v578 = vunpack.c.h.b16 %v89
    %v579 = vunpack.c.l.b16 %v90
    %v580 = vunpack.c.h.b16 %v90
    %v581 = vunpack.c.l.b16 %v91
    %v582 = vunpack.c.h.b16 %v91
    %v583 = vunpack.c.l.b16 %v92
    %v584 = vunpack.c.h.b16 %v92
    %v585 = vunpack.c.l.b16 %v93
    %v586 = vunpack.c.h.b16 %v93
    %v587 = vunpack.c.l.b16 %v94
    %v588 = vunpack.c.h.b16 %v94
    %v589 = vunpack.c.l.b16 %v95
    %v590 = vunpack.c.h.b16 %v95
    %v591 = vunpack.c.l.b16 %v96
    %v592 = vunpack.c.h.b16 %v96
    %v593 = vunpack.c.l.b16 %v97
    %v594 = vunpack.c.h.b16 %v97
    %v595 = vunpack.c.l.b16 %v98
    %v596 = vunpack.c.h.b16 %v98
    %v597 = vunpack.c.l.b16 %v99
    %v598 = vunpack.c.h.b16 %v99
    %v599 = vunpack.c.l.b16 %v100
    %v600 = vunpack.c.h.b16 %v100
    %v601 = vunpack.c.l.b16 %v101
    %v602 = vunpack.c.h.b16 %v101
    %v603 = vunpack.c.l.b16 %v102
    %v604 = vunpack.c.h.b16 %v102
    %v605 = vunpack.c.l.b16 %v103
    %v606 = vunpack.c.h.b16 %v103
    %v607 = vunpack.c.l.b16 %v104
    %v608 = vunpack.c.h.b16 %v104
    %v609 = vunpack.c.l.b16 %v105
    %v610 = vunpack.c.h.b16 %v105
    %v611 = vunpack.c.l.b16 %v106
    %v612 = vunpack.c.h.b16 %v106
    %v613 = vunpack.c.l.b16 %v107
    %v614 = vunpack.c.h.b16 %v107
    %v615 = vunpack.c.l.b16 %v108
    %v616 = vunpack.c.h.b16 %v108
    %v617 = vunpack.c.l.b16 %v109
    %v618 = vunpack.c.h.b16 %v109
    %v619 = vunpack.c.l.b16 %v110
    %v620 = vunpack.c.h.b16 %v110
    %v621 = vunpack.c.l.b16 %v111
    %v622 = vunpack.c.h.b16 %v111
    %v623 = vunpack.c.l.b16 %v112
    %v624 = vunpack.c.h.b16 %v112
    %v625 = vunpack.c.l.b16 %v113
    %v626 = vunpack.c.h.b16 %v113
    %v627 = vunpack.c.l.b16 %v114
    %v628 = vunpack.c.h.b16 %v114
    %v629 = vunpack.c.l.b16 %v115
    %v630 = vunpack.c.h.b16 %v115
    %v631 = vunpack.c.l.b16 %v116
    %v632 = vunpack.c.h.b16 %v116
    %v633 = vunpack.c.l.b16 %v117
    %v634 = vunpack.c.h.b16 %v117
    %v635 = vunpack.c.l.b16 %v118
    %v636 = vunpack.c.h.b16 %v118
    %v637 = vunpack.c.l.b16 %v119
    %v638 = vunpack.c.h.b16 %v119
    %v639 = vunpack.c.l.b16 %v120
    %v640 = vunpack.c.h.b16 %v120
    %v641 = vunpack.c.l.b16 %v121
    %v642 = vunpack.c.h.b16 %v121
    %v643 = vunpack.c.l.b16 %v122
    %v644 = vunpack.c.h.b16 %v122
    %v645 = vunpack.c.l.b16 %v123
    %v646 = vunpack.c.h.b16 %v123
    %v647 = vunpack.c.l.b16 %v124
    %v648 = vunpack.c.h.b16 %v124
    %v649 = vunpack.c.l.b16 %v125
    %v650 = vunpack.c.h.b16 %v125
    %v651 = vunpack.c.l.b16 %v126
    %v652 = vunpack.c.h.b16 %v126
    %v653 = vunpack.c.l.b16 %v127
    %v654 = vunpack.c.h.b16 %v127
    %v655 = vunpack.c.l.b16 %v128
    %v656 = vunpack.c.h.b16 %v128
    %v657 = vunpack.c.l.b16 %v129
    %v658 = vunpack.c.h.b16 %v129
    %v659 = vunpack.c.l.b16 %v130
    %v660 = vunpack.c.h.b16 %v130
    %v661 = vunpack.c.l.b16 %v131
    %v662 = vunpack.c.h.b16 %v131
    %v663 = vunpack.c.l.b16 %v132
    %v664 = vunpack.c.h.b16 %v132
    %v665 = vunpack.c.l.b16 %v133
    %v666 = vunpack.c.h.b16 %v133
    %v667 = vunpack.c.l.b16 %v134
    %v668 = vunpack.c.h.b16 %v134
    %v669 = vunpack.c.l.b16 %v135
    %v670 = vunpack.c.h.b16 %v135
    %v671 = vunpack.c.l.b16 %v136
    %v672 = vunpack.c.h.b16 %v136
    %v673 = vunpack.c.l.b16 %v137
    %v674 = vunpack.c.h.b16 %v137
    %v675 = vunpack.c.l.b16 %v138
    %v676 = vunpack.c.h.b16 %v138
    %v677 = vunpack.c.l.b16 %v139
    %v678 = vunpack.c.h.b16 %v139
    %v679 = vunpack.c.l.b16 %v140
    %v680 = vunpack.c.h.b16 %v140
    %v681 = vunpack.c.l.b16 %v141
    %v682 = vunpack.c.h.b16 %v141
    %v683 = vunpack.c.l.b16 %v142
    %v684 = vunpack.c.h.b16 %v142
    %v685 = vunpack.c.l.b16 %v143
    %v686 = vunpack.c.h.b16 %v143
    %v687 = vunpack.c.l.b16 %v144
    %v688 = vunpack.c.h.b16 %v144
    %v689 = vunpack.c.l.b16 %v145
    %v690 = vunpack.c.h.b16 %v145
    %v691 = vunpack.c.l.b16 %v146
    %v692 = vunpack.c.h.b16 %v146
    %v693 = vunpack.c.l.b16 %v147
    %v694 = vunpack.c.h.b16 %v147
    %v695 = vunpack.c.l.b16 %v148
    %v696 = vunpack.c.h.b16 %v148
    %v697 = vunpack.c.l.b16 %v149
    %v698 = vunpack.c.h.b16 %v149
    %v699 = vunpack.c.l.b16 %v150
    %v700 = vunpack.c.h.b16 %v150
    %v701 = vunpack.c.l.b16 %v151
    %v702 = vunpack.c.h.b16 %v151
    %v703 = vunpack.c.l.b16 %v152
    %v704 = vunpack.c.h.b16 %v152
    %v705 = vunpack.c.l.b16 %v153
    %v706 = vunpack.c.h.b16 %v153
    %v707 = vunpack.c.l.b16 %v154
    %v708 = vunpack.c.h.b16 %v154
    %v709 = vunpack.c.l.b16 %v155
    %v710 = vunpack.c.h.b16 %v155
    %v711 = vunpack.c.l.b16 %v156
    %v712 = vunpack.c.h.b16 %v156
    %v713 = vunpack.c.l.b16 %v157
    %v714 = vunpack.c.h.b16 %v157
    %v715 = vunpack.c.l.b16 %v158
    %v716 = vunpack.c.h.b16 %v158
    %v717 = vunpack.c.l.b16 %v159
    %v718 = vunpack.c.h.b16 %v159
    %v719 = vunpack.c.l.b16 %v160
    %v720 = vunpack.c.h.b16 %v160
    %v721 = vunpack.c.l.b16 %v161
    %v722 = vunpack.c.h.b16 %v161
    %v723 = vunpack.c.l.b16 %v162
    %v724 = vunpack.c.h.b16 %v162
    %v725 = vunpack.c.l.b16 %v163
    %v726 = vunpack.c.h.b16 %v163
    %v727 = vunpack.c.l.b16 %v164
    %v728 = vunpack.c.h.b16 %v164
    %v729 = vunpack.c.l.b16 %v165
    %v730 = vunpack.c.h.b16 %v165
    %v731 = vunpack.c.l.b16 %v166
    %v732 = vunpack.c.h.b16 %v166
    %v733 = vunpack.c.l.b16 %v167
    %v734 = vunpack.c.h.b16 %v167
    %v735 = vunpack.c.l.b16 %v168
    %v736 = vunpack.c.h.b16 %v168
    %v737 = vunpack.c.l.b16 %v169
    %v738 = vunpack.c.h.b16 %v169
    %v739 = vunpack.c.l.b16 %v170
    %v740 = vunpack.c.h.b16 %v170
    %v741 = vunpack.c.l.b16 %v171
    %v742 = vunpack.c.h.b16 %v171
    %v743 = vunpack.c.l.b16 %v172
    %v744 = vunpack.c.h.b16 %v172
    %v745 = vunpack.c.l.b16 %v173
    %v746 = vunpack.c.h.b16 %v173
    %v747 = vunpack.c.l.b16 %v174
    %v748 = vunpack.c.h.b16 %v174
    %v749 = vunpack.c.l.b16 %v175
    %v750 = vunpack.c.h.b16 %v175
    %v751 = vunpack.c.l.b16 %v176
    %v752 = vunpack.c.h.b16 %v176
    %v753 = vunpack.c.l.b16 %v177
    %v754 = vunpack.c.h.b16 %v177
    %v755 = vunpack.c.l.b16 %v178
    %v756 = vunpack.c.h.b16 %v178
    %v757 = vunpack.c.l.b16 %v179
    %v758 = vunpack.c.h.b16 %v179
    %v759 = vunpack.c.l.b16 %v180
    %v760 = vunpack.c.h.b16 %v180
    %v761 = vunpack.c.l.b16 %v181
    %v762 = vunpack.c.h.b16 %v181
    %v763 = vunpack.c.l.b16 %v182
    %v764 = vunpack.c.h.b16 %v182
    %v765 = vunpack.c.l.b16 %v183
    %v766 = vunpack.c.h.b16 %v183
    %v767 = vunpack.c.l.b16 %v184
    %v768 = vunpack.c.h.b16 %v184
    %v769 = vunpack.c.l.b16 %v185
    %v770 = vunpack.c.h.b16 %v185
    %v771 = vunpack.c.l.b16 %v186
    %v772 = vunpack.c.h.b16 %v186
    %v773 = vunpack.c.l.b16 %v187
    %v774 = vunpack.c.h.b16 %v187
    %v775 = vunpack.c.l.b16 %v188
    %v776 = vunpack.c.h.b16 %v188
    %v777 = vunpack.c.l.b16 %v189
    %v778 = vunpack.c.h.b16 %v189
    %v779 = vunpack.c.l.b16 %v190
    %v780 = vunpack.c.h.b16 %v190
    %v781 = vunpack.c.l.b16 %v191
    %v782 = vunpack.c.h.b16 %v191
    %v783 = vunpack.c.l.b16 %v192
    %v784 = vunpack.c.h.b16 %v192
    %v785 = vunpack.c.l.b16 %v193
    %v786 = vunpack.c.h.b16 %v193
    %v787 = vunpack.c.l.b16 %v194
    %v788 = vunpack.c.h.b16 %v194
    %v789 = vunpack.c.l.b16 %v195
    %v790 = vunpack.c.h.b16 %v195
    %v791 = vunpack.c.l.b16 %v196
    %v792 = vunpack.c.h.b16 %v196
    %v793 = vunpack.c.l.b16 %v197
    %v794 = vunpack.c.h.b16 %v197
    %v795 = vunpack.c.l.b16 %v198
    %v796 = vunpack.c.h.b16 %v198
    %v797 = vunpack.c.l.b16 %v199
    %v798 = vunpack.c.h.b16 %v199
    %v799 = vunpack.c.l.b16 %v200
    %v800 = vunpack.c.h.b16 %v200
    %v801 = vunpack.c.l.b16 %v201
    %v802 = vunpack.c.h.b16 %v201
    %v803 = vunpack.c.l.b16 %v202
    %v804 = vunpack.c.h.b16 %v202
    %v805 = vunpack.c.l.b16 %v203
    %v806 = vunpack.c.h.b16 %v203
    %v807 = vunpack.c.l.b16 %v204
    %v808 = vunpack.c.h.b16 %v204
    %v809 = vunpack.c.l.b16 %v205
    %v810 = vunpack.c.h.b16 %v205
    %v811 = vunpack.c.l.b16 %v206
    %v812 = vunpack.c.h.b16 %v206
    %v813 = vunpack.c.l.b16 %v207
    %v814 = vunpack.c.h.b16 %v207
    %v815 = vunpack.c.l.b16 %v208
    %v816 = vunpack.c.h.b16 %v208
    %v817 = vunpack.c.l.b16 %v209
    %v818 = vunpack.c.h.b16 %v209
    %v819 = vunpack.c.l.b16 %v210
    %v820 = vunpack.c.h.b16 %v210
    %v821 = vunpack.c.l.b16 %v211
    %v822 = vunpack.c.h.b16 %v211
    %v823 = vunpack.c.l.b16 %v212
    %v824 = vunpack.c.h.b16 %v212
    %v825 = vunpack.c.l.b16 %v213
    %v826 = vunpack.c.h.b16 %v213
    %v827 = vunpack.c.l.b16 %v214
    %v828 = vunpack.c.h.b16 %v214
    %v829 = vunpack.c.l.b16 %v215
    %v830 = vunpack.c.h.b16 %v215
    %v831 = vunpack.c.l.b16 %v216
    %v832 = vunpack.c.h.b16 %v216
    %v833 = vunpack.c.l.b16 %v217
    %v834 = vunpack.c.h.b16 %v217
    %v835 = vunpack.c.l.b16 %v218
    %v836 = vunpack.c.h.b16 %v218
    %v837 = vunpack.c.l.b16 %v219
    %v838 = vunpack.c.h.b16 %v219
    %v839 = vunpack.c.l.b16 %v220
    %v840 = vunpack.c.h.b16 %v220
    %v841 = vunpack.c.l.b16 %v221
    %v842 = vunpack.c.h.b16 %v221
    %v843 = vunpack.c.l.b16 %v222
    %v844 = vunpack.c.h.b16 %v222
    %v845 = vunpack.c.l.b16 %v223
    %v846 = vunpack.c.h.b16 %v223
    %v847 = vunpack.c.l.b16 %v224
    %v848 = vunpack.c.h.b16 %v224
    %v849 = vunpack.c.l.b16 %v225
    %v850 = vunpack.c.h.b16 %v225
    %v851 = vunpack.c.l.b16 %v226
    %v852 = vunpack.c.h.b16 %v226
    %v853 = vunpack.c.l.b16 %v227
    %v854 = vunpack.c.h.b16 %v227
    %v855 = vunpack.c.l.b16 %v228
    %v856 = vunpack.c.h.b16 %v228
    %v857 = vunpack.c.l.b16 %v229
    %v858 = vunpack.c.h.b16 %v229
    %v859 = vunpack.c.l.b16 %v230
    %v860 = vunpack.c.h.b16 %v230
    %v861 = vunpack.c.l.b16 %v231
    %v862 = vunpack.c.h.b16 %v231
    %v863 = vunpack.c.l.b16 %v232
    %v864 = vunpack.c.h.b16 %v232
    %v865 = vunpack.c.l.b16 %v233
    %v866 = vunpack.c.h.b16 %v233
    %v867 = vunpack.c.l.b16 %v234
    %v868 = vunpack.c.h.b16 %v234
    %v869 = vunpack.c.l.b16 %v235
    %v870 = vunpack.c.h.b16 %v235
    %v871 = vunpack.c.l.b16 %v236
    %v872 = vunpack.c.h.b16 %v236
    %v873 = vunpack.c.l.b16 %v237
    %v874 = vunpack.c.h.b16 %v237
    %v875 = vunpack.c.l.b16 %v238
    %v876 = vunpack.c.h.b16 %v238
    %v877 = vunpack.c.l.b16 %v239
    %v878 = vunpack.c.h.b16 %v239
    %v879 = vunpack.c.l.b16 %v240
    %v880 = vunpack.c.h.b16 %v240
    %v881 = vunpack.c.l.b16 %v241
    %v882 = vunpack.c.h.b16 %v241
    %v883 = vunpack.c.l.b16 %v242
    %v884 = vunpack.c.h.b16 %v242
    %v885 = vunpack.c.l.b16 %v243
    %v886 = vunpack.c.h.b16 %v243
    %v887 = vunpack.c.l.b16 %v244
    %v888 = vunpack.c.h.b16 %v244
    %v889 = vunpack.c.l.b16 %v245
    %v890 = vunpack.c.h.b16 %v245
    %v891 = vunpack.c.l.b16 %v246
    %v892 = vunpack.c.h.b16 %v246
    %v893 = vunpack.c.l.b16 %v247
    %v894 = vunpack.c.h.b16 %v247
    %v895 = vunpack.c.l.b16 %v248
    %v896 = vunpack.c.h.b16 %v248
    %v897 = vunpack.c.l.b16 %v249
    %v898 = vunpack.c.h.b16 %v249
    %v899 = vunpack.c.l.b16 %v250
    %v900 = vunpack.c.h.b16 %v250
    %v901 = vunpack.c.l.b16 %v251
    %v902 = vunpack.c.h.b16 %v251
    %v903 = vunpack.c.l.b16 %v252
    %v904 = vunpack.c.h.b16 %v252
    %v905 = vunpack.c.l.b16 %v253
    %v906 = vunpack.c.h.b16 %v253
    %v907 = vunpack.c.l.b16 %v254
    %v908 = vunpack.c.h.b16 %v254
    %v909 = vunpack.c.l.b16 %v255
    %v910 = vunpack.c.h.b16 %v255
    %v911 = vunpack.c.l.b16 %v256
    %v912 = vunpack.c.h.b16 %v256
    %v913 = vunpack.c.l.b16 %v257
    %v914 = vunpack.c.h.b16 %v257
    %v915 = vunpack.c.l.b16 %v258
    %v916 = vunpack.c.h.b16 %v258
    %v917 = vunpack.c.l.b16 %v259
    %v918 = vunpack.c.h.b16 %v259
    %v919 = vunpack.c.l.b16 %v260
    %v920 = vunpack.c.h.b16 %v260
    %v921 = vunpack.c.l.b16 %v261
    %v922 = vunpack.c.h.b16 %v261
    %v923 = vunpack.c.l.b16 %v262
    %v924 = vunpack.c.h.b16 %v262
    %v925 = vunpack.c.l.b16 %v263
    %v926 = vunpack.c.h.b16 %v263
    %v927 = vunpack.c.l.b16 %v264
    %v928 = vunpack.c.h.b16 %v264
    %v929 = vunpack.c.l.b16 %v265
    %v930 = vunpack.c.h.b16 %v265
    %v931 = vunpack.c.l.b16 %v266
    %v932 = vunpack.c.h.b16 %v266
    %v933 = vunpack.c.l.b16 %v267
    %v934 = vunpack.c.h.b16 %v267
    %v935 = vunpack.c.l.b16 %v268
    %v936 = vunpack.c.h.b16 %v268
    %v937 = vunpack.c.l.b16 %v269
    %v938 = vunpack.c.h.b16 %v269
    %v939 = vunpack.c.l.b16 %v270
    %v940 = vunpack.c.h.b16 %v270
    %v941 = vunpack.c.l.b16 %v271
    %v942 = vunpack.c.h.b16 %v271
    %v943 = vunpack.c.l.b16 %v272
    %v944 = vunpack.c.h.b16 %v272
    %v945 = vunpack.c.l.b16 %v273
    %v946 = vunpack.c.h.b16 %v273
    %v947 = vunpack.c.l.b16 %v274
    %v948 = vunpack.c.h.b16 %v274
    %v949 = vunpack.c.l.b16 %v275
    %v950 = vunpack.c.h.b16 %v275
    %v951 = vunpack.c.l.b16 %v276
    %v952 = vunpack.c.h.b16 %v276
    %v953 = vunpack.c.l.b16 %v277
    %v954 = vunpack.c.h.b16 %v277
    %v955 = vunpack.c.l.b16 %v278
    %v956 = vunpack.c.h.b16 %v278
    %v957 = vunpack.c.l.b16 %v279
    %v958 = vunpack.c.h.b16 %v279
    %v959 = vunpack.c.l.b16 %v280
    %v960 = vunpack.c.h.b16 %v280
    %v961 = vunpack.c.l.b16 %v281
    %v962 = vunpack.c.h.b16 %v281
    %v963 = vunpack.c.l.b16 %v282
    %v964 = vunpack.c.h.b16 %v282
    %v965 = vunpack.c.l.b16 %v283
    %v966 = vunpack.c.h.b16 %v283
    %v967 = vunpack.c.l.b16 %v284
    %v968 = vunpack.c.h.b16 %v284
    %v969 = vunpack.c.l.b16 %v285
    %v970 = vunpack.c.h.b16 %v285
    %v971 = vunpack.c.l.b16 %v286
    %v972 = vunpack.c.h.b16 %v286
    %v973 = vunpack.c.l.b16 %v287
    %v974 = vunpack.c.h.b16 %v287
    %v975 = vunpack.c.l.b16 %v288
    %v976 = vunpack.c.h.b16 %v288
    %v977 = vunpack.c.l.b16 %v289
    %v978 = vunpack.c.h.b16 %v289
    %v979 = vunpack.c.l.b16 %v290
    %v980 = vunpack.c.h.b16 %v290
    %v981 = vunpack.c.l.b16 %v291
    %v982 = vunpack.c.h.b16 %v291
    %v983 = vunpack.c.l.b16 %v292
    %v984 = vunpack.c.h.b16 %v292
    %v985 = vunpack.c.l.b16 %v293
    %v986 = vunpack.c.h.b16 %v293
    %v987 = vunpack.c.l.b16 %v294
    %v988 = vunpack.c.h.b16 %v294
    %v989 = vunpack.c.l.b16 %v295
    %v990 = vunpack.c.h.b16 %v295
    %v991 = vunpack.c.l.b16 %v296
    %v992 = vunpack.c.h.b16 %v296
    %v993 = vunpack.c.l.b16 %v297
    %v994 = vunpack.c.h.b16 %v297
    %v995 = vunpack.c.l.b16 %v298
    %v996 = vunpack.c.h.b16 %v298
    %v997 = vunpack.c.l.b16 %v299
    %v998 = vunpack.c.h.b16 %v299
    %v999 = vunpack.c.l.b16 %v300
    %v1000 = vunpack.c.h.b16 %v300
    %v1001 = vunpack.c.l.b16 %v301
    %v1002 = vunpack.c.h.b16 %v301
    %v1003 = vunpack.c.l.b16 %v302
    %v1004 = vunpack.c.h.b16 %v302
    %v1005 = vunpack.c.l.b16 %v303
    %v1006 = vunpack.c.h.b16 %v303
    %v1007 = vunpack.c.l.b16 %v304
    %v1008 = vunpack.c.h.b16 %v304
    %v1009 = vunpack.c.l.b16 %v305
    %v1010 = vunpack.c.h.b16 %v305
    %v1011 = vunpack.c.l.b16 %v306
    %v1012 = vunpack.c.h.b16 %v306
    %v1013 = vunpack.c.l.b16 %v307
    %v1014 = vunpack.c.h.b16 %v307
    %v1015 = vpack.c.b16 %v571, %v567
    %v1016 = vpack.c.b16 %v572, %v568
    %v1017 = vpack.c.b16 %v573, %v569
    %v1018 = vpack.c.b16 %v574, %v570
    %v1019 = vpack.c.b16 %v579, %v575
    %v1020 = vpack.c.b16 %v580, %v576
    %v1021 = vpack.c.b16 %v581, %v577
    %v1022 = vpack.c.b16 %v582, %v578
    %v1023 = vpack.c.b16 %v587, %v583
    %v1024 = vpack.c.b16 %v588, %v584
    %v1025 = vpack.c.b16 %v589, %v585
    %v1026 = vpack.c.b16 %v590, %v586
    %v1027 = vpack.c.b16 %v595, %v591
    %v1028 = vpack.c.b16 %v596, %v592
    %v1029 = vpack.c.b16 %v597, %v593
    %v1030 = vpack.c.b16 %v598, %v594
    %v1031 = vpack.c.b16 %v603, %v599
    %v1032 = vpack.c.b16 %v604, %v600
    %v1033 = vpack.c.b16 %v605, %v601
    %v1034 = vpack.c.b16 %v606, %v602
    %v1035 = vpack.c.b16 %v611, %v607
    %v1036 = vpack.c.b16 %v612, %v608
    %v1037 = vpack.c.b16 %v613, %v609
    %v1038 = vpack.c.b16 %v614, %v610
    %v1039 = vpack.c.b16 %v619, %v615
    %v1040 = vpack.c.b16 %v620, %v616
    %v1041 = vpack.c.b16 %v621, %v617
    %v1042 = vpack.c.b16 %v622, %v618
    %v1043 = vpack.c.b16 %v627, %v623
    %v1044 = vpack.c.b16 %v628, %v624
    %v1045 = vpack.c.b16 %v629, %v625
    %v1046 = vpack.c.b16 %v630, %v626
    %v1047 = vpack.c.b16 %v635, %v631
    %v1048 = vpack.c.b16 %v636, %v632
    %v1049 = vpack.c.b16 %v637, %v633
    %v1050 = vpack.c.b16 %v638, %v634
    %v1051 = vpack.c.b16 %v643, %v639
    %v1052 = vpack.c.b16 %v644, %v640
    %v1053 = vpack.c.b16 %v645, %v641
    %v1054 = vpack.c.b16 %v646, %v642
    %v1055 = vpack.c.b16 %v651, %v647
    %v1056 = vpack.c.b16 %v652, %v648
    %v1057 = vpack.c.b16 %v653, %v649
    %v1058 = vpack.c.b16 %v654, %v650
    %v1059 = vpack.c.b16 %v659, %v655
    %v1060 = vpack.c.b16 %v660, %v656
    %v1061 = vpack.c.b16 %v661, %v657
    %v1062 = vpack.c.b16 %v662, %v658
    %v1063 = vpack.c.b16 %v667, %v663
    %v1064 = vpack.c.b16 %v668, %v664
    %v1065 = vpack.c.b16 %v669, %v665
    %v1066 = vpack.c.b16 %v670, %v666
    %v1067 = vpack.c.b16 %v675, %v671
    %v1068 = vpack.c.b16 %v676, %v672
    %v1069 = vpack.c.b16 %v677, %v673
    %v1070 = vpack.c.b16 %v678, %v674
    %v1071 = vpack.c.b16 %v683, %v679
    %v1072 = vpack.c.b16 %v684, %v680
    %v1073 = vpack.c.b16 %v685, %v681
    %v1074 = vpack.c.b16 %v686, %v682
    %v1075 = vpack.c.b16 %v691, %v687
    %v1076 = vpack.c.b16 %v692, %v688
    %v1077 = vpack.c.b16 %v693, %v689
    %v1078 = vpack.c.b16 %v694, %v690
    %v1079 = vpack.c.b16 %v699, %v695
    %v1080 = vpack.c.b16 %v700, %v696
    %v1081 = vpack.c.b16 %v701, %v697
    %v1082 = vpack.c.b16 %v702, %v698
    %v1083 = vpack.c.b16 %v707, %v703
    %v1084 = vpack.c.b16 %v708, %v704
    %v1085 = vpack.c.b16 %v709, %v705
    %v1086 = vpack.c.b16 %v710, %v706
    %v1087 = vpack.c.b16 %v715, %v711
    %v1088 = vpack.c.b16 %v716, %v712
    %v1089 = vpack.c.b16 %v717, %v713
    %v1090 = vpack.c.b16 %v718, %v714
    %v1091 = vpack.c.b16 %v723, %v719
    %v1092 = vpack.c.b16 %v724, %v720
    %v1093 = vpack.c.b16 %v725, %v721
    %v1094 = vpack.c.b16 %v726, %v722
    %v1095 = vpack.c.b16 %v731, %v727
    %v1096 = vpack.c.b16 %v732, %v728
    %v1097 = vpack.c.b16 %v733, %v729
    %v1098 = vpack.c.b16 %v734, %v730
    %v1099 = vpack.c.b16 %v739, %v735
    %v1100 = vpack.c.b16 %v740, %v736
    %v1101 = vpack.c.b16 %v741, %v737
    %v1102 = vpack.c.b16 %v742, %v738
    %v1103 = vpack.c.b16 %v747, %v743
    %v1104 = vpack.c.b16 %v748, %v744
    %v1105 = vpack.c.b16 %v749, %v745
    %v1106 = vpack.c.b16 %v750, %v746
    %v1107 = vpack.c.b16 %v755, %v751
    %v1108 = vpack.c.b16 %v756, %v752
    %v1109 = vpack.c.b16 %v757, %v753
    %v1110 = vpack.c.b16 %v758, %v754
    %v1111 = vpack.c.b16 %v763, %v759
    %v1112 = vpack.c.b16 %v764, %v760
    %v1113 = vpack.c.b16 %v765, %v761
    %v1114 = vpack.c.b16 %v766, %v762
    %v1115 = vpack.c.b16 %v771, %v767
    %v1116 = vpack.c.b16 %v772, %v768
    %v1117 = vpack.c.b16 %v773, %v769
    %v1118 = vpack.c.b16 %v774, %v770
    %v1119 = vpack.c.b16 %v779, %v775
    %v1120 = vpack.c.b16 %v780, %v776
    %v1121 = vpack.c.b16 %v781, %v777
    %v1122 = vpack.c.b16 %v782, %v778
    %v1123 = vpack.c.b16 %v787, %v783
    %v1124 = vpack.c.b16 %v788, %v784
    %v1125 = vpack.c.b16 %v789, %v785
    %v1126 = vpack.c.b16 %v790, %v786
    %v1127 = vpack.c.b16 %v795, %v791
    %v1128 = vpack.c.b16 %v796, %v792
    %v1129 = vpack.c.b16 %v797, %v793
    %v1130 = vpack.c.b16 %v798, %v794
    %v1131 = vpack.c.b16 %v803, %v799
    %v1132 = vpack.c.b16 %v804, %v800
    %v1133 = vpack.c.b16 %v805, %v801
    %v1134 = vpack.c.b16 %v806, %v802
    %v1135 = vpack.c.b16 %v811, %v807
    %v1136 = vpack.c.b16 %v812, %v808
    %v1137 = vpack.c.b16 %v813, %v809
    %v1138 = vpack.c.b16 %v814, %v810
    %v1139 = vpack.c.b16 %v819, %v815
    %v1140 = vpack.c.b16 %v820, %v816
    %v1141 = vpack.c.b16 %v821, %v817
    %v1142 = vpack.c.b16 %v822, %v818
    %v1143 = vpack.c.b16 %v827, %v823
    %v1144 = vpack.c.b16 %v828, %v824
    %v1145 = vpack.c.b16 %v829, %v825
    %v1146 = vpack.c.b16 %v830, %v826
    %v1147 = vpack.c.b16 %v835, %v831
    %v1148 = vpack.c.b16 %v836, %v832
    %v1149 = vpack.c.b16 %v837, %v833
    %v1150 = vpack.c.b16 %v838, %v834
    %v1151 = vpack.c.b16 %v843, %v839
    %v1152 = vpack.c.b16 %v844, %v840
    %v1153 = vpack.c.b16 %v845, %v841
    %v1154 = vpack.c.b16 %v846, %v842
    %v1155 = vpack.c.b16 %v851, %v847
    %v1156 = vpack.c.b16 %v852, %v848
    %v1157 = vpack.c.b16 %v853, %v849
    %v1158 = vpack.c.b16 %v854, %v850
    %v1159 = vpack.c.b16 %v859, %v855
    %v1160 = vpack.c.b16 %v860, %v856
    %v1161 = vpack.c.b16 %v861, %v857
    %v1162 = vpack.c.b16 %v862, %v858
    %v1163 = vpack.c.b16 %v867, %v863
    %v1164 = vpack.c.b16 %v868, %v864
    %v1165 = vpack.c.b16 %v869, %v865
    %v1166 = vpack.c.b16 %v870, %v866
    %v1167 = vpack.c.b16 %v875, %v871
    %v1168 = vpack.c.b16 %v876, %v872
    %v1169 = vpack.c.b16 %v877, %v873
    %v1170 = vpack.c.b16 %v878, %v874
    %v1171 = vpack.c.b16 %v883, %v879
    %v1172 = vpack.c.b16 %v884, %v880
    %v1173 = vpack.c.b16 %v885, %v881
    %v1174 = vpack.c.b16 %v886, %v882
    %v1175 = vpack.c.b16 %v891, %v887
    %v1176 = vpack.c.b16 %v892, %v888
    %v1177 = vpack.c.b16 %v893, %v889
    %v1178 = vpack.c.b16 %v894, %v890
    %v1179 = vpack.c.b16 %v899, %v895
    %v1180 = vpack.c.b16 %v900, %v896
    %v1181 = vpack.c.b16 %v901, %v897
    %v1182 = vpack.c.b16 %v902, %v898
    %v1183 = vpack.c.b16 %v907, %v903
    %v1184 = vpack.c.b16 %v908, %v904
    %v1185 = vpack.c.b16 %v909, %v905
    %v1186 = vpack.c.b16 %v910, %v906
    %v1187 = vpack.c.b16 %v915, %v911
    %v1188 = vpack.c.b16 %v916, %v912
    %v1189 = vpack.c.b16 %v917, %v913
    %v1190 = vpack.c.b16 %v918, %v914
    %v1191 = vpack.c.b16 %v923, %v919
    %v1192 = vpack.c.b16 %v924, %v920
    %v1193 = vpack.c.b16 %v925, %v921
    %v1194 = vpack.c.b16 %v926, %v922
    %v1195 = vpack.c.b16 %v931, %v927
    %v1196 = vpack.c.b16 %v932, %v928
    %v1197 = vpack.c.b16 %v933, %v929
    %v1198 = vpack.c.b16 %v934, %v930
    %v1199 = vpack.c.b16 %v939, %v935
    %v1200 = vpack.c.b16 %v940, %v936
    %v1201 = vpack.c.b16 %v941, %v937
    %v1202 = vpack.c.b16 %v942, %v938
    %v1203 = vpack.c.b16 %v947, %v943
    %v1204 = vpack.c.b16 %v948, %v944
    %v1205 = vpack.c.b16 %v949, %v945
    %v1206 = vpack.c.b16 %v950, %v946
    %v1207 = vpack.c.b16 %v955, %v951
    %v1208 = vpack.c.b16 %v956, %v952
    %v1209 = vpack.c.b16 %v957, %v953
    %v1210 = vpack.c.b16 %v958, %v954
    %v1211 = vpack.c.b16 %v963, %v959
    %v1212 = vpack.c.b16 %v964, %v960
    %v1213 = vpack.c.b16 %v965, %v961
    %v1214 = vpack.c.b16 %v966, %v962
    %v1215 = vpack.c.b16 %v971, %v967
    %v1216 = vpack.c.b16 %v972, %v968
    %v1217 = vpack.c.b16 %v973, %v969
    %v1218 = vpack.c.b16 %v974, %v970
    %v1219 = vpack.c.b16 %v979, %v975
    %v1220 = vpack.c.b16 %v980, %v976
    %v1221 = vpack.c.b16 %v981, %v977
    %v1222 = vpack.c.b16 %v982, %v978
    %v1223 = vpack.c.b16 %v987, %v983
    %v1224 = vpack.c.b16 %v988, %v984
    %v1225 = vpack.c.b16 %v989, %v985
    %v1226 = vpack.c.b16 %v990, %v986
    %v1227 = vpack.c.b16 %v995, %v991
    %v1228 = vpack.c.b16 %v996, %v992
    %v1229 = vpack.c.b16 %v997, %v993
    %v1230 = vpack.c.b16 %v998, %v994
    %v1231 = vpack.c.b16 %v1003, %v999
    %v1232 = vpack.c.b16 %v1004, %v1000
    %v1233 = vpack.c.b16 %v1005, %v1001
    %v1234 = vpack.c.b16 %v1006, %v1002
    %v1235 = vpack.c.b16 %v1011, %v1007
    %v1236 = vpack.c.b16 %v1012, %v1008
    %v1237 = vpack.c.b16 %v1013, %v1009
    %v1238 = vpack.c.b16 %v1014, %v1010
    %1463 = vmatpush.bf16.msra.mxu0 %v1043
    %1464 = vmatpush.bf16.msra.mxu0 %v1039
    %1465 = vmatpush.bf16.msra.mxu0 %v1035
    %1466 = vmatpush.bf16.msra.mxu0 %v1031
    %1467 = vmatpush.bf16.msra.mxu0 %v1027
    %1468 = vmatpush.bf16.msra.mxu0 %v1023
    %1469 = vmatpush.bf16.msra.mxu0 %v1019
    %1470 = vmatpush.bf16.msra.mxu0 %v1015
    %1471 = vmatmul.bf16.gmra.mxu0 %v329
    %v1472 = vpop.f32.mrf.mxu0
    %v1473 = vadd.f32 %v310, %v1472
    %v1474 = vpop.f32.mrf.mxu0
    %1475 = vdwg.mxu0
    %1476 = vmatpush.bf16.msra.mxu0 %v1075
    %1477 = vmatpush.bf16.msra.mxu0 %v1071
    %1478 = vmatpush.bf16.msra.mxu0 %v1067
    %1479 = vmatpush.bf16.msra.mxu0 %v1063
    %1480 = vmatpush.bf16.msra.mxu0 %v1059
    %1481 = vmatpush.bf16.msra.mxu0 %v1055
    %1482 = vmatpush.bf16.msra.mxu0 %v1051
    %1483 = vmatpush.bf16.msra.mxu0 %v1047
    %1484 = vmatmul.bf16.gmra.mxu0 %v330
    %v1485 = vpop.f32.mrf.mxu0
    %v1486 = vadd.f32 %v1473, %v1485
    %v1487 = vpop.f32.mrf.mxu0
    %1488 = vdwg.mxu0
    %1489 = vmatpush.bf16.msra.mxu0 %v1107
    %1490 = vmatpush.bf16.msra.mxu0 %v1103
    %1491 = vmatpush.bf16.msra.mxu0 %v1099
    %1492 = vmatpush.bf16.msra.mxu0 %v1095
    %1493 = vmatpush.bf16.msra.mxu0 %v1091
    %1494 = vmatpush.bf16.msra.mxu0 %v1087
    %1495 = vmatpush.bf16.msra.mxu0 %v1083
    %1496 = vmatpush.bf16.msra.mxu0 %v1079
    %1497 = vmatmul.bf16.gmra.mxu0 %v331
    %v1498 = vpop.f32.mrf.mxu0
    %v1499 = vadd.f32 %v1486, %v1498
    %v1500 = vpop.f32.mrf.mxu0
    %1501 = vdwg.mxu0
    %1502 = vmatpush.bf16.msra.mxu0 %v1139
    %1503 = vmatpush.bf16.msra.mxu0 %v1135
    %1504 = vmatpush.bf16.msra.mxu0 %v1131
    %1505 = vmatpush.bf16.msra.mxu0 %v1127
    %1506 = vmatpush.bf16.msra.mxu0 %v1123
    %1507 = vmatpush.bf16.msra.mxu0 %v1119
    %1508 = vmatpush.bf16.msra.mxu0 %v1115
    %1509 = vmatpush.bf16.msra.mxu0 %v1111
    %1510 = vmatmul.bf16.gmra.mxu0 %v332
    %v1511 = vpop.f32.mrf.mxu0
    %v1512 = vadd.f32 %v1499, %v1511
    %v1513 = vpop.f32.mrf.mxu0
    %1514 = vdwg.mxu0
    %1515 = vmatpush.bf16.msra.mxu0 %v1171
    %1516 = vmatpush.bf16.msra.mxu0 %v1167
    %1517 = vmatpush.bf16.msra.mxu0 %v1163
    %1518 = vmatpush.bf16.msra.mxu0 %v1159
    %1519 = vmatpush.bf16.msra.mxu0 %v1155
    %1520 = vmatpush.bf16.msra.mxu0 %v1151
    %1521 = vmatpush.bf16.msra.mxu0 %v1147
    %1522 = vmatpush.bf16.msra.mxu0 %v1143
    %1523 = vmatmul.bf16.gmra.mxu0 %v333
    %v1524 = vpop.f32.mrf.mxu0
    %v1525 = vadd.f32 %v1512, %v1524
    %v1526 = vpop.f32.mrf.mxu0
    %1527 = vdwg.mxu0
    %1528 = vmatpush.bf16.msra.mxu0 %v1203
    %1529 = vmatpush.bf16.msra.mxu0 %v1199
    %1530 = vmatpush.bf16.msra.mxu0 %v1195
    %1531 = vmatpush.bf16.msra.mxu0 %v1191
    %1532 = vmatpush.bf16.msra.mxu0 %v1187
    %1533 = vmatpush.bf16.msra.mxu0 %v1183
    %1534 = vmatpush.bf16.msra.mxu0 %v1179
    %1535 = vmatpush.bf16.msra.mxu0 %v1175
    %1536 = vmatmul.bf16.gmra.mxu0 %v334
    %v1537 = vpop.f32.mrf.mxu0
    %v1538 = vadd.f32 %v1525, %v1537
    %v1539 = vpop.f32.mrf.mxu0
    %1540 = vdwg.mxu0
    %1541 = vmatpush.bf16.msra.mxu0 %v1235
    %1542 = vmatpush.bf16.msra.mxu0 %v1231
    %1543 = vmatpush.bf16.msra.mxu0 %v1227
    %1544 = vmatpush.bf16.msra.mxu0 %v1223
    %1545 = vmatpush.bf16.msra.mxu0 %v1219
    %1546 = vmatpush.bf16.msra.mxu0 %v1215
    %1547 = vmatpush.bf16.msra.mxu0 %v1211
    %1548 = vmatpush.bf16.msra.mxu0 %v1207
    %1549 = vmatmul.bf16.gmra.mxu0 %v335
    %v1550 = vpop.f32.mrf.mxu0
    %v1551 = vadd.f32 %v1538, %v1550
    %v1552 = vpop.f32.mrf.mxu0
    %1553 = vdwg.mxu0
    %1554 = vmatpush.bf16.msra.mxu0 %v1044
    %1555 = vmatpush.bf16.msra.mxu0 %v1040
    %1556 = vmatpush.bf16.msra.mxu0 %v1036
    %1557 = vmatpush.bf16.msra.mxu0 %v1032
    %1558 = vmatpush.bf16.msra.mxu0 %v1028
    %1559 = vmatpush.bf16.msra.mxu0 %v1024
    %1560 = vmatpush.bf16.msra.mxu0 %v1020
    %1561 = vmatpush.bf16.msra.mxu0 %v1016
    %1562 = vmatmul.bf16.gmra.mxu0 %v329
    %v1563 = vpop.f32.mrf.mxu0
    %v1564 = vadd.f32 %v311, %v1563
    %v1565 = vpop.f32.mrf.mxu0
    %1566 = vdwg.mxu0
    %1567 = vmatpush.bf16.msra.mxu0 %v1076
    %1568 = vmatpush.bf16.msra.mxu0 %v1072
    %1569 = vmatpush.bf16.msra.mxu0 %v1068
    %1570 = vmatpush.bf16.msra.mxu0 %v1064
    %1571 = vmatpush.bf16.msra.mxu0 %v1060
    %1572 = vmatpush.bf16.msra.mxu0 %v1056
    %1573 = vmatpush.bf16.msra.mxu0 %v1052
    %1574 = vmatpush.bf16.msra.mxu0 %v1048
    %1575 = vmatmul.bf16.gmra.mxu0 %v330
    %v1576 = vpop.f32.mrf.mxu0
    %v1577 = vadd.f32 %v1564, %v1576
    %v1578 = vpop.f32.mrf.mxu0
    %1579 = vdwg.mxu0
    %1580 = vmatpush.bf16.msra.mxu0 %v1108
    %1581 = vmatpush.bf16.msra.mxu0 %v1104
    %1582 = vmatpush.bf16.msra.mxu0 %v1100
    %1583 = vmatpush.bf16.msra.mxu0 %v1096
    %1584 = vmatpush.bf16.msra.mxu0 %v1092
    %1585 = vmatpush.bf16.msra.mxu0 %v1088
    %1586 = vmatpush.bf16.msra.mxu0 %v1084
    %1587 = vmatpush.bf16.msra.mxu0 %v1080
    %1588 = vmatmul.bf16.gmra.mxu0 %v331
    %v1589 = vpop.f32.mrf.mxu0
    %v1590 = vadd.f32 %v1577, %v1589
    %v1591 = vpop.f32.mrf.mxu0
    %1592 = vdwg.mxu0
    %1593 = vmatpush.bf16.msra.mxu0 %v1140
    %1594 = vmatpush.bf16.msra.mxu0 %v1136
    %1595 = vmatpush.bf16.msra.mxu0 %v1132
    %1596 = vmatpush.bf16.msra.mxu0 %v1128
    %1597 = vmatpush.bf16.msra.mxu0 %v1124
    %1598 = vmatpush.bf16.msra.mxu0 %v1120
    %1599 = vmatpush.bf16.msra.mxu0 %v1116
    %1600 = vmatpush.bf16.msra.mxu0 %v1112
    %1601 = vmatmul.bf16.gmra.mxu0 %v332
    %v1602 = vpop.f32.mrf.mxu0
    %v1603 = vadd.f32 %v1590, %v1602
    %v1604 = vpop.f32.mrf.mxu0
    %1605 = vdwg.mxu0
    %1606 = vmatpush.bf16.msra.mxu0 %v1172
    %1607 = vmatpush.bf16.msra.mxu0 %v1168
    %1608 = vmatpush.bf16.msra.mxu0 %v1164
    %1609 = vmatpush.bf16.msra.mxu0 %v1160
    %1610 = vmatpush.bf16.msra.mxu0 %v1156
    %1611 = vmatpush.bf16.msra.mxu0 %v1152
    %1612 = vmatpush.bf16.msra.mxu0 %v1148
    %1613 = vmatpush.bf16.msra.mxu0 %v1144
    %1614 = vmatmul.bf16.gmra.mxu0 %v333
    %v1615 = vpop.f32.mrf.mxu0
    %v1616 = vadd.f32 %v1603, %v1615
    %v1617 = vpop.f32.mrf.mxu0
    %1618 = vdwg.mxu0
    %1619 = vmatpush.bf16.msra.mxu0 %v1204
    %1620 = vmatpush.bf16.msra.mxu0 %v1200
    %1621 = vmatpush.bf16.msra.mxu0 %v1196
    %1622 = vmatpush.bf16.msra.mxu0 %v1192
    %1623 = vmatpush.bf16.msra.mxu0 %v1188
    %1624 = vmatpush.bf16.msra.mxu0 %v1184
    %1625 = vmatpush.bf16.msra.mxu0 %v1180
    %1626 = vmatpush.bf16.msra.mxu0 %v1176
    %1627 = vmatmul.bf16.gmra.mxu0 %v334
    %v1628 = vpop.f32.mrf.mxu0
    %v1629 = vadd.f32 %v1616, %v1628
    %v1630 = vpop.f32.mrf.mxu0
    %1631 = vdwg.mxu0
    %1632 = vmatpush.bf16.msra.mxu0 %v1236
    %1633 = vmatpush.bf16.msra.mxu0 %v1232
    %1634 = vmatpush.bf16.msra.mxu0 %v1228
    %1635 = vmatpush.bf16.msra.mxu0 %v1224
    %1636 = vmatpush.bf16.msra.mxu0 %v1220
    %1637 = vmatpush.bf16.msra.mxu0 %v1216
    %1638 = vmatpush.bf16.msra.mxu0 %v1212
    %1639 = vmatpush.bf16.msra.mxu0 %v1208
    %1640 = vmatmul.bf16.gmra.mxu0 %v335
    %v1641 = vpop.f32.mrf.mxu0
    %v1642 = vadd.f32 %v1629, %v1641
    %v1643 = vpop.f32.mrf.mxu0
    %1644 = vdwg.mxu0
    %1645 = vmatpush.bf16.msra.mxu0 %v1045
    %1646 = vmatpush.bf16.msra.mxu0 %v1041
    %1647 = vmatpush.bf16.msra.mxu0 %v1037
    %1648 = vmatpush.bf16.msra.mxu0 %v1033
    %1649 = vmatpush.bf16.msra.mxu0 %v1029
    %1650 = vmatpush.bf16.msra.mxu0 %v1025
    %1651 = vmatpush.bf16.msra.mxu0 %v1021
    %1652 = vmatpush.bf16.msra.mxu0 %v1017
    %1653 = vmatmul.bf16.gmra.mxu0 %v329
    %v1654 = vpop.f32.mrf.mxu0
    %v1655 = vadd.f32 %v312, %v1654
    %v1656 = vpop.f32.mrf.mxu0
    %1657 = vdwg.mxu0
    %1658 = vmatpush.bf16.msra.mxu0 %v1077
    %1659 = vmatpush.bf16.msra.mxu0 %v1073
    %1660 = vmatpush.bf16.msra.mxu0 %v1069
    %1661 = vmatpush.bf16.msra.mxu0 %v1065
    %1662 = vmatpush.bf16.msra.mxu0 %v1061
    %1663 = vmatpush.bf16.msra.mxu0 %v1057
    %1664 = vmatpush.bf16.msra.mxu0 %v1053
    %1665 = vmatpush.bf16.msra.mxu0 %v1049
    %1666 = vmatmul.bf16.gmra.mxu0 %v330
    %v1667 = vpop.f32.mrf.mxu0
    %v1668 = vadd.f32 %v1655, %v1667
    %v1669 = vpop.f32.mrf.mxu0
    %1670 = vdwg.mxu0
    %1671 = vmatpush.bf16.msra.mxu0 %v1109
    %1672 = vmatpush.bf16.msra.mxu0 %v1105
    %1673 = vmatpush.bf16.msra.mxu0 %v1101
    %1674 = vmatpush.bf16.msra.mxu0 %v1097
    %1675 = vmatpush.bf16.msra.mxu0 %v1093
    %1676 = vmatpush.bf16.msra.mxu0 %v1089
    %1677 = vmatpush.bf16.msra.mxu0 %v1085
    %1678 = vmatpush.bf16.msra.mxu0 %v1081
    %1679 = vmatmul.bf16.gmra.mxu0 %v331
    %v1680 = vpop.f32.mrf.mxu0
    %v1681 = vadd.f32 %v1668, %v1680
    %v1682 = vpop.f32.mrf.mxu0
    %1683 = vdwg.mxu0
    %1684 = vmatpush.bf16.msra.mxu0 %v1141
    %1685 = vmatpush.bf16.msra.mxu0 %v1137
    %1686 = vmatpush.bf16.msra.mxu0 %v1133
    %1687 = vmatpush.bf16.msra.mxu0 %v1129
    %1688 = vmatpush.bf16.msra.mxu0 %v1125
    %1689 = vmatpush.bf16.msra.mxu0 %v1121
    %1690 = vmatpush.bf16.msra.mxu0 %v1117
    %1691 = vmatpush.bf16.msra.mxu0 %v1113
    %1692 = vmatmul.bf16.gmra.mxu0 %v332
    %v1693 = vpop.f32.mrf.mxu0
    %v1694 = vadd.f32 %v1681, %v1693
    %v1695 = vpop.f32.mrf.mxu0
    %1696 = vdwg.mxu0
    %1697 = vmatpush.bf16.msra.mxu0 %v1173
    %1698 = vmatpush.bf16.msra.mxu0 %v1169
    %1699 = vmatpush.bf16.msra.mxu0 %v1165
    %1700 = vmatpush.bf16.msra.mxu0 %v1161
    %1701 = vmatpush.bf16.msra.mxu0 %v1157
    %1702 = vmatpush.bf16.msra.mxu0 %v1153
    %1703 = vmatpush.bf16.msra.mxu0 %v1149
    %1704 = vmatpush.bf16.msra.mxu0 %v1145
    %1705 = vmatmul.bf16.gmra.mxu0 %v333
    %v1706 = vpop.f32.mrf.mxu0
    %v1707 = vadd.f32 %v1694, %v1706
    %v1708 = vpop.f32.mrf.mxu0
    %1709 = vdwg.mxu0
    %1710 = vmatpush.bf16.msra.mxu0 %v1205
    %1711 = vmatpush.bf16.msra.mxu0 %v1201
    %1712 = vmatpush.bf16.msra.mxu0 %v1197
    %1713 = vmatpush.bf16.msra.mxu0 %v1193
    %1714 = vmatpush.bf16.msra.mxu0 %v1189
    %1715 = vmatpush.bf16.msra.mxu0 %v1185
    %1716 = vmatpush.bf16.msra.mxu0 %v1181
    %1717 = vmatpush.bf16.msra.mxu0 %v1177
    %1718 = vmatmul.bf16.gmra.mxu0 %v334
    %v1719 = vpop.f32.mrf.mxu0
    %v1720 = vadd.f32 %v1707, %v1719
    %v1721 = vpop.f32.mrf.mxu0
    %1722 = vdwg.mxu0
    %1723 = vmatpush.bf16.msra.mxu0 %v1237
    %1724 = vmatpush.bf16.msra.mxu0 %v1233
    %1725 = vmatpush.bf16.msra.mxu0 %v1229
    %1726 = vmatpush.bf16.msra.mxu0 %v1225
    %1727 = vmatpush.bf16.msra.mxu0 %v1221
    %1728 = vmatpush.bf16.msra.mxu0 %v1217
    %1729 = vmatpush.bf16.msra.mxu0 %v1213
    %1730 = vmatpush.bf16.msra.mxu0 %v1209
    %1731 = vmatmul.bf16.gmra.mxu0 %v335
    %v1732 = vpop.f32.mrf.mxu0
    %v1733 = vadd.f32 %v1720, %v1732
    %v1734 = vpop.f32.mrf.mxu0
    %1735 = vdwg.mxu0
    %1736 = vmatpush.bf16.msra.mxu0 %v1046
    %1737 = vmatpush.bf16.msra.mxu0 %v1042
    %1738 = vmatpush.bf16.msra.mxu0 %v1038
    %1739 = vmatpush.bf16.msra.mxu0 %v1034
    %1740 = vmatpush.bf16.msra.mxu0 %v1030
    %1741 = vmatpush.bf16.msra.mxu0 %v1026
    %1742 = vmatpush.bf16.msra.mxu0 %v1022
    %1743 = vmatpush.bf16.msra.mxu0 %v1018
    %1744 = vmatmul.bf16.gmra.mxu0 %v329
    %v1745 = vpop.f32.mrf.mxu0
    %v1746 = vadd.f32 %v313, %v1745
    %v1747 = vpop.f32.mrf.mxu0
    %1748 = vdwg.mxu0
    %1749 = vmatpush.bf16.msra.mxu0 %v1078
    %1750 = vmatpush.bf16.msra.mxu0 %v1074
    %1751 = vmatpush.bf16.msra.mxu0 %v1070
    %1752 = vmatpush.bf16.msra.mxu0 %v1066
    %1753 = vmatpush.bf16.msra.mxu0 %v1062
    %1754 = vmatpush.bf16.msra.mxu0 %v1058
    %1755 = vmatpush.bf16.msra.mxu0 %v1054
    %1756 = vmatpush.bf16.msra.mxu0 %v1050
    %1757 = vmatmul.bf16.gmra.mxu0 %v330
    %v1758 = vpop.f32.mrf.mxu0
    %v1759 = vadd.f32 %v1746, %v1758
    %v1760 = vpop.f32.mrf.mxu0
    %1761 = vdwg.mxu0
    %1762 = vmatpush.bf16.msra.mxu0 %v1110
    %1763 = vmatpush.bf16.msra.mxu0 %v1106
    %1764 = vmatpush.bf16.msra.mxu0 %v1102
    %1765 = vmatpush.bf16.msra.mxu0 %v1098
    %1766 = vmatpush.bf16.msra.mxu0 %v1094
    %1767 = vmatpush.bf16.msra.mxu0 %v1090
    %1768 = vmatpush.bf16.msra.mxu0 %v1086
    %1769 = vmatpush.bf16.msra.mxu0 %v1082
    %1770 = vmatmul.bf16.gmra.mxu0 %v331
    %v1771 = vpop.f32.mrf.mxu0
    %v1772 = vadd.f32 %v1759, %v1771
    %v1773 = vpop.f32.mrf.mxu0
    %1774 = vdwg.mxu0
    %1775 = vmatpush.bf16.msra.mxu0 %v1142
    %1776 = vmatpush.bf16.msra.mxu0 %v1138
    %1777 = vmatpush.bf16.msra.mxu0 %v1134
    %1778 = vmatpush.bf16.msra.mxu0 %v1130
    %1779 = vmatpush.bf16.msra.mxu0 %v1126
    %1780 = vmatpush.bf16.msra.mxu0 %v1122
    %1781 = vmatpush.bf16.msra.mxu0 %v1118
    %1782 = vmatpush.bf16.msra.mxu0 %v1114
    %1783 = vmatmul.bf16.gmra.mxu0 %v332
    %v1784 = vpop.f32.mrf.mxu0
    %v1785 = vadd.f32 %v1772, %v1784
    %v1786 = vpop.f32.mrf.mxu0
    %1787 = vdwg.mxu0
    %1788 = vmatpush.bf16.msra.mxu0 %v1174
    %1789 = vmatpush.bf16.msra.mxu0 %v1170
    %1790 = vmatpush.bf16.msra.mxu0 %v1166
    %1791 = vmatpush.bf16.msra.mxu0 %v1162
    %1792 = vmatpush.bf16.msra.mxu0 %v1158
    %1793 = vmatpush.bf16.msra.mxu0 %v1154
    %1794 = vmatpush.bf16.msra.mxu0 %v1150
    %1795 = vmatpush.bf16.msra.mxu0 %v1146
    %1796 = vmatmul.bf16.gmra.mxu0 %v333
    %v1797 = vpop.f32.mrf.mxu0
    %v1798 = vadd.f32 %v1785, %v1797
    %v1799 = vpop.f32.mrf.mxu0
    %1800 = vdwg.mxu0
    %1801 = vmatpush.bf16.msra.mxu0 %v1206
    %1802 = vmatpush.bf16.msra.mxu0 %v1202
    %1803 = vmatpush.bf16.msra.mxu0 %v1198
    %1804 = vmatpush.bf16.msra.mxu0 %v1194
    %1805 = vmatpush.bf16.msra.mxu0 %v1190
    %1806 = vmatpush.bf16.msra.mxu0 %v1186
    %1807 = vmatpush.bf16.msra.mxu0 %v1182
    %1808 = vmatpush.bf16.msra.mxu0 %v1178
    %1809 = vmatmul.bf16.gmra.mxu0 %v334
    %v1810 = vpop.f32.mrf.mxu0
    %v1811 = vadd.f32 %v1798, %v1810
    %v1812 = vpop.f32.mrf.mxu0
    %1813 = vdwg.mxu0
    %1814 = vmatpush.bf16.msra.mxu0 %v1238
    %1815 = vmatpush.bf16.msra.mxu0 %v1234
    %1816 = vmatpush.bf16.msra.mxu0 %v1230
    %1817 = vmatpush.bf16.msra.mxu0 %v1226
    %1818 = vmatpush.bf16.msra.mxu0 %v1222
    %1819 = vmatpush.bf16.msra.mxu0 %v1218
    %1820 = vmatpush.bf16.msra.mxu0 %v1214
    %1821 = vmatpush.bf16.msra.mxu0 %v1210
    %1822 = vmatmul.bf16.gmra.mxu0 %v335
    %v1823 = vpop.f32.mrf.mxu0
    %v1824 = vadd.f32 %v1811, %v1823
    %v1825 = vpop.f32.mrf.mxu0
    %1826 = vdwg.mxu0
    %v1827 = vmax.f32 %v1551, 0.0
    %v1828 = vmax.f32 %v1642, 0.0
    %v1829 = vmax.f32 %v1733, 0.0
    %v1830 = vmax.f32 %v1824, 0.0
    %v1831 = vpack.c.bf16 %v1827, %v1827
    %v1832 = vpack.c.bf16 %v1828, %v1828
    %v1833 = vpack.c.bf16 %v1829, %v1829
    %v1834 = vpack.c.bf16 %v1830, %v1830
    %v1835 = vld [vmem:[#allocation8] sm:$0xf]
    %v1836 = vld [vmem:[#allocation8 + $0x4] sm:$0xf]
    %v1837 = vld [vmem:[#allocation8 + $0x8] sm:$0xf]
    %v1838 = vld [vmem:[#allocation8 + $0xc] sm:$0xf]
    %v1839 = vld [vmem:[#allocation8 + $0x10] sm:$0xf]
    %v1840 = vld [vmem:[#allocation8 + $0x14] sm:$0xf]
    %v1841 = vld [vmem:[#allocation8 + $0x18] sm:$0xf]
    %v1842 = vld [vmem:[#allocation8 + $0x1c] sm:$0xf]
    %v1843 = vld [vmem:[#allocation8 + $0x20] sm:$0xf]
    %v1844 = vld [vmem:[#allocation8 + $0x24] sm:$0xf]
    %v1845 = vld [vmem:[#allocation8 + $0x28] sm:$0xf]
    %v1846 = vld [vmem:[#allocation8 + $0x2c] sm:$0xf]
    %v1847 = vld [vmem:[#allocation8 + $0x30] sm:$0xf]
    %v1848 = vld [vmem:[#allocation8 + $0x34] sm:$0xf]
    %v1849 = vld [vmem:[#allocation8 + $0x38] sm:$0xf]
    %v1850 = vld [vmem:[#allocation8 + $0x3c] sm:$0xf]
    %v1851 = vld [vmem:[#allocation8 + $0x40] sm:$0xf]
    %v1852 = vld [vmem:[#allocation8 + $0x44] sm:$0xf]
    %v1853 = vld [vmem:[#allocation8 + $0x48] sm:$0xf]
    %v1854 = vld [vmem:[#allocation8 + $0x4c] sm:$0xf]
    %v1855 = vld [vmem:[#allocation8 + $0x50] sm:$0xf]
    %v1856 = vld [vmem:[#allocation8 + $0x54] sm:$0xf]
    %v1857 = vld [vmem:[#allocation8 + $0x58] sm:$0xf]
    %v1858 = vld [vmem:[#allocation8 + $0x5c] sm:$0xf]
    %v1859 = vld [vmem:[#allocation8 + $0x60] sm:$0xf]
    %v1860 = vld [vmem:[#allocation8 + $0x64] sm:$0xf]
    %v1861 = vld [vmem:[#allocation8 + $0x68] sm:$0xf]
    %v1862 = vld [vmem:[#allocation8 + $0x6c] sm:$0xf]
    %v1863 = vld [vmem:[#allocation8 + $0x70] sm:$0xf]
    %v1864 = vld [vmem:[#allocation8 + $0x74] sm:$0xf]
    %v1865 = vld [vmem:[#allocation8 + $0x78] sm:$0xf]
    %v1866 = vld [vmem:[#allocation8 + $0x7c] sm:$0xf]
    %v1867 = vld [vmem:[#allocation8 + $0x80] sm:$0xf]
    %v1868 = vld [vmem:[#allocation8 + $0x84] sm:$0xf]
    %v1869 = vld [vmem:[#allocation8 + $0x88] sm:$0xf]
    %v1870 = vld [vmem:[#allocation8 + $0x8c] sm:$0xf]
    %v1871 = vld [vmem:[#allocation8 + $0x90] sm:$0xf]
    %v1872 = vld [vmem:[#allocation8 + $0x94] sm:$0xf]
    %v1873 = vld [vmem:[#allocation8 + $0x98] sm:$0xf]
    %v1874 = vld [vmem:[#allocation8 + $0x9c] sm:$0xf]
    %v1875 = vld [vmem:[#allocation8 + $0xa0] sm:$0xf]
    %v1876 = vld [vmem:[#allocation8 + $0xa4] sm:$0xf]
    %v1877 = vld [vmem:[#allocation8 + $0xa8] sm:$0xf]
    %v1878 = vld [vmem:[#allocation8 + $0xac] sm:$0xf]
    %v1879 = vld [vmem:[#allocation8 + $0xb0] sm:$0xf]
    %v1880 = vld [vmem:[#allocation8 + $0xb4] sm:$0xf]
    %v1881 = vld [vmem:[#allocation8 + $0xb8] sm:$0xf]
    %v1882 = vld [vmem:[#allocation8 + $0xbc] sm:$0xf]
    %v1883 = vld [vmem:[#allocation8 + $0xc0] sm:$0xf]
    %v1884 = vld [vmem:[#allocation8 + $0xc4] sm:$0xf]
    %v1885 = vld [vmem:[#allocation8 + $0xc8] sm:$0xf]
    %v1886 = vld [vmem:[#allocation8 + $0xcc] sm:$0xf]
    %v1887 = vld [vmem:[#allocation8 + $0xd0] sm:$0xf]
    %v1888 = vld [vmem:[#allocation8 + $0xd4] sm:$0xf]
    %v1889 = vld [vmem:[#allocation8 + $0xd8] sm:$0xf]
    %v1890 = vld [vmem:[#allocation8 + $0xdc] sm:$0xf]
    %v1891 = vld [vmem:[#allocation8 + $0xe0] sm:$0xf]
    %v1892 = vld [vmem:[#allocation8 + $0xe4] sm:$0xf]
    %v1893 = vld [vmem:[#allocation8 + $0xe8] sm:$0xf]
    %v1894 = vld [vmem:[#allocation8 + $0xec] sm:$0xf]
    %v1895 = vld [vmem:[#allocation8 + $0xf0] sm:$0xf]
    %v1896 = vld [vmem:[#allocation8 + $0xf4] sm:$0xf]
    %v1897 = vld [vmem:[#allocation8 + $0xf8] sm:$0xf]
    %v1898 = vld [vmem:[#allocation8 + $0xfc] sm:$0xf]
    %v1899 = vld [vmem:[%s4] sm:$0x1]
    %v1901 = vperm.slane %v1899, 0
    %v1967 = vunpack.c.l.b16 %v1835
    %v1968 = vunpack.c.l.b16 %v1836
    %v1969 = vunpack.c.l.b16 %v1837
    %v1970 = vunpack.c.l.b16 %v1838
    %v1971 = vunpack.c.l.b16 %v1839
    %v1972 = vunpack.c.l.b16 %v1840
    %v1973 = vunpack.c.l.b16 %v1841
    %v1974 = vunpack.c.l.b16 %v1842
    %v1975 = vunpack.c.l.b16 %v1843
    %v1976 = vunpack.c.l.b16 %v1844
    %v1977 = vunpack.c.l.b16 %v1845
    %v1978 = vunpack.c.l.b16 %v1846
    %v1979 = vunpack.c.l.b16 %v1847
    %v1980 = vunpack.c.l.b16 %v1848
    %v1981 = vunpack.c.l.b16 %v1849
    %v1982 = vunpack.c.l.b16 %v1850
    %v1983 = vunpack.c.l.b16 %v1851
    %v1984 = vunpack.c.l.b16 %v1852
    %v1985 = vunpack.c.l.b16 %v1853
    %v1986 = vunpack.c.l.b16 %v1854
    %v1987 = vunpack.c.l.b16 %v1855
    %v1988 = vunpack.c.l.b16 %v1856
    %v1989 = vunpack.c.l.b16 %v1857
    %v1990 = vunpack.c.l.b16 %v1858
    %v1991 = vunpack.c.l.b16 %v1859
    %v1992 = vunpack.c.l.b16 %v1860
    %v1993 = vunpack.c.l.b16 %v1861
    %v1994 = vunpack.c.l.b16 %v1862
    %v1995 = vunpack.c.l.b16 %v1863
    %v1996 = vunpack.c.l.b16 %v1864
    %v1997 = vunpack.c.l.b16 %v1865
    %v1998 = vunpack.c.l.b16 %v1866
    %v1999 = vunpack.c.l.b16 %v1867
    %v2000 = vunpack.c.l.b16 %v1868
    %v2001 = vunpack.c.l.b16 %v1869
    %v2002 = vunpack.c.l.b16 %v1870
    %v2003 = vunpack.c.l.b16 %v1871
    %v2004 = vunpack.c.l.b16 %v1872
    %v2005 = vunpack.c.l.b16 %v1873
    %v2006 = vunpack.c.l.b16 %v1874
    %v2007 = vunpack.c.l.b16 %v1875
    %v2008 = vunpack.c.l.b16 %v1876
    %v2009 = vunpack.c.l.b16 %v1877
    %v2010 = vunpack.c.l.b16 %v1878
    %v2011 = vunpack.c.l.b16 %v1879
    %v2012 = vunpack.c.l.b16 %v1880
    %v2013 = vunpack.c.l.b16 %v1881
    %v2014 = vunpack.c.l.b16 %v1882
    %v2015 = vunpack.c.l.b16 %v1883
    %v2016 = vunpack.c.l.b16 %v1884
    %v2017 = vunpack.c.l.b16 %v1885
    %v2018 = vunpack.c.l.b16 %v1886
    %v2019 = vunpack.c.l.b16 %v1887
    %v2020 = vunpack.c.l.b16 %v1888
    %v2021 = vunpack.c.l.b16 %v1889
    %v2022 = vunpack.c.l.b16 %v1890
    %v2023 = vunpack.c.l.b16 %v1891
    %v2024 = vunpack.c.l.b16 %v1892
    %v2025 = vunpack.c.l.b16 %v1893
    %v2026 = vunpack.c.l.b16 %v1894
    %v2027 = vunpack.c.l.b16 %v1895
    %v2028 = vunpack.c.l.b16 %v1896
    %v2029 = vunpack.c.l.b16 %v1897
    %v2030 = vunpack.c.l.b16 %v1898
    %v2031 = vpack.c.b16 %v1968, %v1967
    %v2032 = vpack.c.b16 %v1970, %v1969
    %v2033 = vpack.c.b16 %v1972, %v1971
    %v2034 = vpack.c.b16 %v1974, %v1973
    %v2035 = vpack.c.b16 %v1976, %v1975
    %v2036 = vpack.c.b16 %v1978, %v1977
    %v2037 = vpack.c.b16 %v1980, %v1979
    %v2038 = vpack.c.b16 %v1982, %v1981
    %v2039 = vpack.c.b16 %v1984, %v1983
    %v2040 = vpack.c.b16 %v1986, %v1985
    %v2041 = vpack.c.b16 %v1988, %v1987
    %v2042 = vpack.c.b16 %v1990, %v1989
    %v2043 = vpack.c.b16 %v1992, %v1991
    %v2044 = vpack.c.b16 %v1994, %v1993
    %v2045 = vpack.c.b16 %v1996, %v1995
    %v2046 = vpack.c.b16 %v1998, %v1997
    %v2047 = vpack.c.b16 %v2000, %v1999
    %v2048 = vpack.c.b16 %v2002, %v2001
    %v2049 = vpack.c.b16 %v2004, %v2003
    %v2050 = vpack.c.b16 %v2006, %v2005
    %v2051 = vpack.c.b16 %v2008, %v2007
    %v2052 = vpack.c.b16 %v2010, %v2009
    %v2053 = vpack.c.b16 %v2012, %v2011
    %v2054 = vpack.c.b16 %v2014, %v2013
    %v2055 = vpack.c.b16 %v2016, %v2015
    %v2056 = vpack.c.b16 %v2018, %v2017
    %v2057 = vpack.c.b16 %v2020, %v2019
    %v2058 = vpack.c.b16 %v2022, %v2021
    %v2059 = vpack.c.b16 %v2024, %v2023
    %v2060 = vpack.c.b16 %v2026, %v2025
    %v2061 = vpack.c.b16 %v2028, %v2027
    %v2062 = vpack.c.b16 %v2030, %v2029
    %2095 = vmatpush.bf16.msra.mxu0 %v2038
    %2096 = vmatpush.bf16.msra.mxu0 %v2037
    %2097 = vmatpush.bf16.msra.mxu0 %v2036
    %2098 = vmatpush.bf16.msra.mxu0 %v2035
    %2099 = vmatpush.bf16.msra.mxu0 %v2034
    %2100 = vmatpush.bf16.msra.mxu0 %v2033
    %2101 = vmatpush.bf16.msra.mxu0 %v2032
    %2102 = vmatpush.bf16.msra.mxu0 %v2031
    %2103 = vmatmul.bf16.gmra.mxu0 %v1831
    %v2104 = vpop.f32.mrf.mxu0
    %v2105 = vadd.f32 %v1901, %v2104
    %v2106 = vpop.f32.mrf.mxu0
    %2107 = vdwg.mxu0
    %2108 = vmatpush.bf16.msra.mxu0 %v2046
    %2109 = vmatpush.bf16.msra.mxu0 %v2045
    %2110 = vmatpush.bf16.msra.mxu0 %v2044
    %2111 = vmatpush.bf16.msra.mxu0 %v2043
    %2112 = vmatpush.bf16.msra.mxu0 %v2042
    %2113 = vmatpush.bf16.msra.mxu0 %v2041
    %2114 = vmatpush.bf16.msra.mxu0 %v2040
    %2115 = vmatpush.bf16.msra.mxu0 %v2039
    %2116 = vmatmul.bf16.gmra.mxu0 %v1832
    %v2117 = vpop.f32.mrf.mxu0
    %v2118 = vadd.f32 %v2105, %v2117
    %v2119 = vpop.f32.mrf.mxu0
    %2120 = vdwg.mxu0
    %2121 = vmatpush.bf16.msra.mxu0 %v2054
    %2122 = vmatpush.bf16.msra.mxu0 %v2053
    %2123 = vmatpush.bf16.msra.mxu0 %v2052
    %2124 = vmatpush.bf16.msra.mxu0 %v2051
    %2125 = vmatpush.bf16.msra.mxu0 %v2050
    %2126 = vmatpush.bf16.msra.mxu0 %v2049
    %2127 = vmatpush.bf16.msra.mxu0 %v2048
    %2128 = vmatpush.bf16.msra.mxu0 %v2047
    %2129 = vmatmul.bf16.gmra.mxu0 %v1833
    %v2130 = vpop.f32.mrf.mxu0
    %v2131 = vadd.f32 %v2118, %v2130
    %v2132 = vpop.f32.mrf.mxu0
    %2133 = vdwg.mxu0
    %2134 = vmatpush.bf16.msra.mxu0 %v2062
    %2135 = vmatpush.bf16.msra.mxu0 %v2061
    %2136 = vmatpush.bf16.msra.mxu0 %v2060
    %2137 = vmatpush.bf16.msra.mxu0 %v2059
    %2138 = vmatpush.bf16.msra.mxu0 %v2058
    %2139 = vmatpush.bf16.msra.mxu0 %v2057
    %2140 = vmatpush.bf16.msra.mxu0 %v2056
    %2141 = vmatpush.bf16.msra.mxu0 %v2055
    %2142 = vmatmul.bf16.gmra.mxu0 %v1834
    %v2143 = vpop.f32.mrf.mxu0
    %v2144 = vadd.f32 %v2131, %v2143
    %v2145 = vpop.f32.mrf.mxu0
    %2146 = vdwg.mxu0
    %2147 = vst [vmem:[#allocation10] sm:$0xff] %v2144
    // Predicated region
    $region38: #{tpu_custom_call.1} parent=1 // pred_check
      _
    $region39: #{tpu_custom_call.1} parent=1 // pred_check_branch
      %2149 = sbr.rel (0) target = $region41
    $region40: #{tpu_custom_call.1} parent=1 // pred_region
      %2151 = vsyncadd [#allocation4], 0
      %s2153 = sshll.u32 [#allocation10], 4
      %s2154 = int_to_ptr.vmem [resolvable:$true] %s2153
      %s2155 = sshll.u32 %s5, 4
      %s2156 = int_to_ptr.hbm [resolvable:$true] %s2155
      %2158 = dma.vmem_to_hbm [thread:$0]  %s2154, 128, %s2156, [#allocation4]
    $region41: #{tpu_custom_call.1} parent=1 // pred_fallthru
      _
    // Predicated region
    $region42: #{tpu_custom_call.1} parent=1 // pred_check
      _
    $region43: #{tpu_custom_call.1} parent=1 // pred_check_branch
      %2160 = sbr.rel (0) target = $region45
    $region44: #{tpu_custom_call.1} parent=1 // pred_region
      %2162 = dma.done [#allocation4], 128
    $region45: #{tpu_custom_call.1} parent=1 // pred_fallthru
      _
    %2163 = vsyncpa [#allocation3], 1
    %2164 = vsyncpa [#allocation6], 1
    %2165 = vsyncpa [#allocation9], 1
    %2166 = vsyncpa [#allocation4], 1

</llo_original>
